<compile_context>
chip_gen: v5e
topology: v5e:2x2
jax: 0.10.0
libtpu: 0.0.40
codegen_flags: <defaults>
</compile_context>

<pallas_src>
import functools

import jax
import jax.numpy as jnp
import numpy as np
from jax import lax
from jax.experimental import pallas as pl
from jax.experimental.pallas import tpu as pltpu

PAD = 4                      # padding for the largest dilation (4)
DILATIONS = (1, 2, 4)


def dafm_kernel(patches_ref, x_ref, wconv_ref, bnsc_ref, bnsh_ref,
                wl1_ref, bl1_ref, wl2_ref, bl2_ref, wdg_ref, sigma_ref,
                out_ref, *, C, HW):
    # ---- all three dilated 3x3 convs in ONE MXU call ----------------------
    # wconv is block-diagonal (3C, 27C); patches is (27C, HW).
    conv = jnp.dot(wconv_ref[...], patches_ref[0],
                   preferred_element_type=jnp.float32)            # (3C, HW)
    # eval-mode BN folded to per-channel scale/shift
    # (conv3x3 bias already folded into bnsh rows [0:C] by the wrapper)
    conv = conv * bnsc_ref[...] + bnsh_ref[...]                   # (3C, HW)

    b1 = conv[0:C]                                                # (C, HW)
    b2 = conv[C:2 * C]
    b3 = conv[2 * C:3 * C]

    # ---- channel attention -------------------------------------------------
    feat_fus = b1 + b2 + b3                                       # (C, HW)
    pooled = (jnp.mean(feat_fus, axis=1, keepdims=True)
              + jnp.max(feat_fus, axis=1, keepdims=True))         # (C, 1)
    mid = jnp.maximum(
        jnp.dot(wl1_ref[...], pooled, preferred_element_type=jnp.float32)
        + bl1_ref[...], 0.0)                                      # (C//2, 1)
    # all three lineal2 heads batched in one matmul
    logits = (jnp.dot(wl2_ref[...], mid, preferred_element_type=jnp.float32)
              + bl2_ref[...])                                     # (3C, 1)

    def softmax_col(l):          # softmax over the C channels (sublanes)
        m = jnp.max(l, axis=0, keepdims=True)
        e = jnp.exp(l - m)
        return e * pl.reciprocal(jnp.sum(e, axis=0, keepdims=True), approx=True)

    a1 = softmax_col(logits[0:C])                                 # (C, 1)
    a2 = softmax_col(logits[C:2 * C])
    a3 = softmax_col(logits[2 * C:3 * C])
    feat_o_1 = a1 * b1 + a2 * b2 + a3 * b3                        # (C, HW)

    # ---- dconv (1x1, 3C->C, relu) + spatial gate (1x1, 3C->1, sigmoid) -----
    # fused into one matmul; row C of wdg is the gate (conv1) weight.
    fused = jnp.dot(wdg_ref[...], conv,
                    preferred_element_type=jnp.float32)           # (C+8, HW)
    feat_ = jnp.maximum(fused[0:C], 0.0)                          # (C, HW)
    gate = fused[C:C + 1]                                         # (1, HW)
    feat_space = pl.reciprocal(1.0 + jnp.exp(-gate), approx=True)  # sigmoid
    feat_o_2 = feat_ * feat_space                                 # (C, HW)

    # ---- residual fusion ----------------------------------------------------
    sigma = sigma_ref[0, 0]
    out_ref[0] = jnp.maximum(
        x_ref[0] + sigma * feat_o_1 + (1.0 - sigma) * feat_o_2, 0.0)


def _im2col(x_nchw):
    """(B, C, H, W) -> (B, 27*C, H*W) patch matrix for dilations (1, 2, 4)."""
    B, C, H, W = x_nchw.shape
    xp = jnp.pad(x_nchw, ((0, 0), (0, 0), (PAD, PAD), (PAD, PAD)))
    cols = []
    for d in DILATIONS:
        for ky in range(3):
            for kx in range(3):
                oh = PAD + (ky - 1) * d
                ow = PAD + (kx - 1) * d
                cols.append(xp[:, :, oh:oh + H, ow:ow + W].reshape(B, C, H * W))
    return jnp.concatenate(cols, axis=1)


def pack_params(params, C):
    """Repack PyTorch-style parameters into kernel-friendly matrices."""
    eps = 1e-5
    sc = params['gamma'] / jnp.sqrt(params['var'] + eps)          # (3, C)
    sh = params['beta'] - params['mean'] * sc                     # (3, C)
    # fold the branch-1 conv bias into the branch-1 BN shift
    sh = sh.at[0].add(params['b3'] * sc[0])
    bn_scale = sc.reshape(3 * C, 1)
    bn_shift = sh.reshape(3 * C, 1)

    # conv3x3 weight (OIHW) -> (C_out, 9*C_in), then block-diag over dilations
    w_flat = jnp.transpose(params['w3'], (0, 2, 3, 1)).reshape(C, 9 * C)
    wconv = jnp.kron(jnp.eye(3, dtype=w_flat.dtype), w_flat)      # (3C, 27C)

    wl1 = params['wl1']                                           # (C//2, C)
    bl1 = params['bl1'].reshape(C // 2, 1)
    wl2 = params['wl2'].reshape(3 * C, C // 2)                    # (3C, C//2)
    bl2 = params['bl2'].reshape(3 * C, 1)

    # dconv weight (C, 3C) with the 1x1 spatial-gate weight appended as row C
    wdg = jnp.zeros((C + 8, 3 * C), jnp.float32)
    wdg = wdg.at[0:C].set(params['wd'])
    wdg = wdg.at[C].set(params['wc1'])

    sigma = params['sigma'].reshape(1, 1)
    return dict(wconv=wconv, bn_scale=bn_scale, bn_shift=bn_shift,
                wl1=wl1, bl1=bl1, wl2=wl2, bl2=bl2, wdg=wdg, sigma=sigma)


def dafm_forward(x_nchw, params):
    B, C, H, W = x_nchw.shape
    HW = H * W
    patches = _im2col(x_nchw)                                     # (B, 27C, HW)
    x_flat = x_nchw.reshape(B, C, HW)
    kp = pack_params(params, C)

    kernel = functools.partial(dafm_kernel, C=C, HW=HW)

    def full(shape):
        return pl.BlockSpec(shape, lambda b, _n=len(shape): (0,) * _n)

    in_specs = [
        pl.BlockSpec((1, 27 * C, HW), lambda b: (b, 0, 0)),       # im2col patches
        pl.BlockSpec((1, C, HW), lambda b: (b, 0, 0)),            # residual input
        full((3 * C, 27 * C)),   # block-diag conv weight
        full((3 * C, 1)),        # BN scale (stacked per branch)
        full((3 * C, 1)),        # BN shift (+ folded conv bias)
        full((C // 2, C)),       # lineal1 weight
        full((C // 2, 1)),       # lineal1 bias
        full((3 * C, C // 2)),   # lineal2 weights (3 heads stacked)
        full((3 * C, 1)),        # lineal2 biases
        full((C + 8, 3 * C)),    # dconv weight + gate weight (row C)
        full((1, 1)),            # sigma
    ]
    out_spec = pl.BlockSpec((1, C, HW), lambda b: (b, 0, 0))

    out = pl.pallas_call(
        kernel,
        out_shape=jax.ShapeDtypeStruct((B, C, HW), jnp.float32),
        grid_spec=pltpu.PrefetchScalarGridSpec(
            num_scalar_prefetch=0,
            grid=(B,),
            in_specs=in_specs,
            out_specs=out_spec,
        ),
        compiler_params=pltpu.CompilerParams(
            dimension_semantics=("parallel",),
            vmem_limit_bytes=32 * 1024 * 1024),
    )(patches, x_flat, kp['wconv'], kp['bn_scale'], kp['bn_shift'],
      kp['wl1'], kp['bl1'], kp['wl2'], kp['bl2'], kp['wdg'], kp['sigma'])
    return out.reshape(B, C, H, W)


def init_params(key, C):
    ks = jax.random.split(key, 13)
    s = 0.1
    return dict(
        w3=jax.random.normal(ks[0], (C, C, 3, 3), jnp.float32) * s,   # OIHW
        b3=jax.random.normal(ks[1], (C,), jnp.float32) * s,
        gamma=1.0 + 0.1 * jax.random.normal(ks[2], (3, C), jnp.float32),
        beta=0.1 * jax.random.normal(ks[3], (3, C), jnp.float32),
        mean=0.1 * jax.random.normal(ks[4], (3, C), jnp.float32),
        var=jax.random.uniform(ks[5], (3, C), jnp.float32, minval=0.5, maxval=1.5),
        wl1=jax.random.normal(ks[6], (C // 2, C), jnp.float32) * s,
        bl1=jax.random.normal(ks[7], (C // 2,), jnp.float32) * s,
        wl2=jax.random.normal(ks[8], (3, C, C // 2), jnp.float32) * s,
        bl2=jax.random.normal(ks[9], (3, C), jnp.float32) * s,
        wc1=jax.random.normal(ks[10], (3 * C,), jnp.float32) * s,
        wd=jax.random.normal(ks[11], (C, 3 * C), jnp.float32) * s,
        sigma=jax.random.uniform(ks[12], (1,), jnp.float32, minval=0.2, maxval=0.8),
    )


def reference(x, p):
    """Pure-JAX NCHW reference of the PyTorch DAFM forward (eval-mode BN)."""
    eps = 1e-5
    sc = p['gamma'] / jnp.sqrt(p['var'] + eps)
    sh = p['beta'] - p['mean'] * sc

    def conv_d(d):
        return lax.conv_general_dilated(
            x, p['w3'], window_strides=(1, 1), padding=[(d, d), (d, d)],
            rhs_dilation=(d, d), dimension_numbers=('NCHW', 'OIHW', 'NCHW'))

    def bn(v, i):
        return v * sc[i][None, :, None, None] + sh[i][None, :, None, None]

    b1 = bn(conv_d(1) + p['b3'][None, :, None, None], 0)
    b2 = bn(conv_d(2), 1)
    b3 = bn(conv_d(4), 2)
    feat_fus = b1 + b2 + b3
    pooled = feat_fus.mean(axis=(2, 3)) + feat_fus.max(axis=(2, 3))        # (B, C)
    mid = jax.nn.relu(pooled @ p['wl1'].T + p['bl1'])                      # (B, C//2)
    logits = jnp.stack([mid @ p['wl2'][i].T + p['bl2'][i] for i in range(3)],
                       axis=2)                                             # (B, C, 3)
    att = jax.nn.softmax(logits, axis=1)                                   # over C
    feat_o_1 = (att[:, :, 0][:, :, None, None] * b1
                + att[:, :, 1][:, :, None, None] * b2
                + att[:, :, 2][:, :, None, None] * b3)
    feat_con = jnp.concatenate([b1, b2, b3], axis=1)                       # (B, 3C, H, W)
    fs = jnp.einsum('bchw,c->bhw', feat_con, p['wc1'])[:, None]
    feat_space = jax.nn.sigmoid(fs)
    feat_ = jax.nn.relu(jnp.einsum('bchw,dc->bdhw', feat_con, p['wd']))
    feat_o_2 = feat_ * feat_space
    sigma = p['sigma'][0]
    return jax.nn.relu(x + sigma * feat_o_1 + (1.0 - sigma) * feat_o_2)


if __name__ == "__main__":
    B, C, H, W = 2, 16, 16, 16
    key = jax.random.PRNGKey(0)
    k_x, k_p = jax.random.split(key)

    x = jax.random.normal(k_x, (B, C, H, W), jnp.float32)   # NCHW, like PyTorch
    params = init_params(k_p, C)

    out = jax.block_until_ready(dafm_forward(x, params))
    ref = jax.block_until_ready(reference(x, params))
    np.testing.assert_allclose(np.asarray(out), np.asarray(ref),
                               rtol=2e-2, atol=2e-2)
    print("KERNEL_OK")
</pallas_src>

<mosaic_0001>
module attributes {stable_mosaic.version = 11 : i64} {
  func.func @dafm_kernel(%arg0: i32, %arg1: memref<1x432x256xf32, #tpu.memory_space<vmem>>, %arg2: memref<1x16x256xf32, #tpu.memory_space<vmem>>, %arg3: memref<48x432xf32, #tpu.memory_space<vmem>>, %arg4: memref<48x1xf32, #tpu.memory_space<vmem>>, %arg5: memref<48x1xf32, #tpu.memory_space<vmem>>, %arg6: memref<8x16xf32, #tpu.memory_space<vmem>>, %arg7: memref<8x1xf32, #tpu.memory_space<vmem>>, %arg8: memref<48x8xf32, #tpu.memory_space<vmem>>, %arg9: memref<48x1xf32, #tpu.memory_space<vmem>>, %arg10: memref<24x48xf32, #tpu.memory_space<vmem>>, %arg11: memref<1x1xf32, #tpu.memory_space<vmem>>, %arg12: memref<1x16x256xf32, #tpu.memory_space<vmem>>) attributes {dimension_semantics = [#tpu.dimension_semantics<parallel>], iteration_bounds = array<i64: 2>, scalar_prefetch = 0 : i64, scratch_operands = 0 : i64, tpu.core_type = #tpu.core_type<tc>, window_params = [{transform_indices = @transform_0, window_bounds = array<i64: 1, 432, 256>}, {transform_indices = @transform_1, window_bounds = array<i64: 1, 16, 256>}, {pipeline_mode = #tpu.pipeline_mode<synchronous>, transform_indices = @transform_2, window_bounds = array<i64: 48, 432>}, {pipeline_mode = #tpu.pipeline_mode<synchronous>, transform_indices = @transform_3, window_bounds = array<i64: 48, 1>}, {pipeline_mode = #tpu.pipeline_mode<synchronous>, transform_indices = @transform_4, window_bounds = array<i64: 48, 1>}, {pipeline_mode = #tpu.pipeline_mode<synchronous>, transform_indices = @transform_5, window_bounds = array<i64: 8, 16>}, {pipeline_mode = #tpu.pipeline_mode<synchronous>, transform_indices = @transform_6, window_bounds = array<i64: 8, 1>}, {pipeline_mode = #tpu.pipeline_mode<synchronous>, transform_indices = @transform_7, window_bounds = array<i64: 48, 8>}, {pipeline_mode = #tpu.pipeline_mode<synchronous>, transform_indices = @transform_8, window_bounds = array<i64: 48, 1>}, {pipeline_mode = #tpu.pipeline_mode<synchronous>, transform_indices = @transform_9, window_bounds = array<i64: 24, 48>}, {pipeline_mode = #tpu.pipeline_mode<synchronous>, transform_indices = @transform_10, window_bounds = array<i64: 1, 1>}, {transform_indices = @transform_11, window_bounds = array<i64: 1, 16, 256>}]} {
    %c0 = arith.constant 0 : index
    %c0_0 = arith.constant 0 : index
    %0 = vector.load %arg3[%c0, %c0_0] : memref<48x432xf32, #tpu.memory_space<vmem>>, vector<48x432xf32>
    %c0_1 = arith.constant 0 : index
    %c0_2 = arith.constant 0 : index
    %c0_3 = arith.constant 0 : index
    %1 = vector.load %arg1[%c0_1, %c0_2, %c0_3] : memref<1x432x256xf32, #tpu.memory_space<vmem>>, vector<1x432x256xf32>
    %2 = vector.shape_cast %1 : vector<1x432x256xf32> to vector<432x256xf32>
    %cst = arith.constant dense<0.000000e+00> : vector<48x256xf32>
    %3 = tpu.matmul %0, %2, %cst {dimension_numbers = #tpu.dot_dimension_numbers<[1], [0], [0], [1], [0, 0, 1, 1], [], []>} : vector<48x432xf32>, vector<432x256xf32>, vector<48x256xf32> -> vector<48x256xf32>
    %c0_4 = arith.constant 0 : index
    %c0_5 = arith.constant 0 : index
    %4 = vector.load %arg4[%c0_4, %c0_5] : memref<48x1xf32, #tpu.memory_space<vmem>>, vector<48x1xf32>
    %5 = vector.broadcast %4 : vector<48x1xf32> to vector<48x256xf32>
    %6 = arith.mulf %3, %5 : vector<48x256xf32>
    %c0_6 = arith.constant 0 : index
    %c0_7 = arith.constant 0 : index
    %7 = vector.load %arg5[%c0_6, %c0_7] : memref<48x1xf32, #tpu.memory_space<vmem>>, vector<48x1xf32>
    %8 = vector.broadcast %7 : vector<48x1xf32> to vector<48x256xf32>
    %9 = arith.addf %6, %8 : vector<48x256xf32>
    %10 = vector.extract_strided_slice %9 {offsets = [0, 0], sizes = [16, 256], strides = [1, 1]} : vector<48x256xf32> to vector<16x256xf32>
    %11 = vector.extract_strided_slice %9 {offsets = [16, 0], sizes = [16, 256], strides = [1, 1]} : vector<48x256xf32> to vector<16x256xf32>
    %12 = vector.extract_strided_slice %9 {offsets = [32, 0], sizes = [16, 256], strides = [1, 1]} : vector<48x256xf32> to vector<16x256xf32>
    %13 = arith.addf %10, %11 : vector<16x256xf32>
    %14 = arith.addf %13, %12 : vector<16x256xf32>
    %cst_8 = arith.constant dense<0.000000e+00> : vector<16xf32>
    %15 = vector.multi_reduction <add>, %14, %cst_8 [1] : vector<16x256xf32> to vector<16xf32>
    %16 = vector.shape_cast %15 : vector<16xf32> to vector<16x1xf32>
    %cst_9 = arith.constant 2.560000e+02 : f32
    %17 = vector.broadcast %cst_9 : f32 to vector<16x1xf32>
    %18 = arith.divf %16, %17 : vector<16x1xf32>
    %cst_10 = arith.constant dense<0xFF800000> : vector<16xf32>
    %19 = vector.multi_reduction <maximumf>, %14, %cst_10 [1] : vector<16x256xf32> to vector<16xf32>
    %20 = vector.shape_cast %19 : vector<16xf32> to vector<16x1xf32>
    %21 = arith.addf %18, %20 : vector<16x1xf32>
    %c0_11 = arith.constant 0 : index
    %c0_12 = arith.constant 0 : index
    %22 = vector.load %arg6[%c0_11, %c0_12] : memref<8x16xf32, #tpu.memory_space<vmem>>, vector<8x16xf32>
    %cst_13 = arith.constant dense<0.000000e+00> : vector<8x1xf32>
    %23 = tpu.matmul %22, %21, %cst_13 {dimension_numbers = #tpu.dot_dimension_numbers<[1], [0], [0], [1], [0, 0, 1, 1], [], []>} : vector<8x16xf32>, vector<16x1xf32>, vector<8x1xf32> -> vector<8x1xf32>
    %c0_14 = arith.constant 0 : index
    %c0_15 = arith.constant 0 : index
    %24 = vector.load %arg7[%c0_14, %c0_15] : memref<8x1xf32, #tpu.memory_space<vmem>>, vector<8x1xf32>
    %25 = arith.addf %23, %24 : vector<8x1xf32>
    %cst_16 = arith.constant 0.000000e+00 : f32
    %26 = vector.broadcast %cst_16 : f32 to vector<8x1xf32>
    %27 = arith.maximumf %25, %26 : vector<8x1xf32>
    %c0_17 = arith.constant 0 : index
    %c0_18 = arith.constant 0 : index
    %28 = vector.load %arg8[%c0_17, %c0_18] : memref<48x8xf32, #tpu.memory_space<vmem>>, vector<48x8xf32>
    %cst_19 = arith.constant dense<0.000000e+00> : vector<48x1xf32>
    %29 = tpu.matmul %28, %27, %cst_19 {dimension_numbers = #tpu.dot_dimension_numbers<[1], [0], [0], [1], [0, 0, 1, 1], [], []>} : vector<48x8xf32>, vector<8x1xf32>, vector<48x1xf32> -> vector<48x1xf32>
    %c0_20 = arith.constant 0 : index
    %c0_21 = arith.constant 0 : index
    %30 = vector.load %arg9[%c0_20, %c0_21] : memref<48x1xf32, #tpu.memory_space<vmem>>, vector<48x1xf32>
    %31 = arith.addf %29, %30 : vector<48x1xf32>
    %32 = vector.extract_strided_slice %31 {offsets = [0, 0], sizes = [16, 1], strides = [1, 1]} : vector<48x1xf32> to vector<16x1xf32>
    %cst_22 = arith.constant dense<0xFF800000> : vector<1xf32>
    %33 = vector.multi_reduction <maximumf>, %32, %cst_22 [0] : vector<16x1xf32> to vector<1xf32>
    %34 = vector.shape_cast %33 : vector<1xf32> to vector<1x1xf32>
    %35 = vector.broadcast %34 : vector<1x1xf32> to vector<16x1xf32>
    %36 = arith.subf %32, %35 : vector<16x1xf32>
    %37 = math.exp %36 : vector<16x1xf32>
    %cst_23 = arith.constant dense<0.000000e+00> : vector<1xf32>
    %38 = vector.multi_reduction <add>, %37, %cst_23 [0] : vector<16x1xf32> to vector<1xf32>
    %39 = vector.shape_cast %38 : vector<1xf32> to vector<1x1xf32>
    %40 = tpu.reciprocal %39 {approx = true} : vector<1x1xf32> -> vector<1x1xf32>
    %41 = vector.broadcast %40 : vector<1x1xf32> to vector<16x1xf32>
    %42 = arith.mulf %37, %41 : vector<16x1xf32>
    %43 = vector.extract_strided_slice %31 {offsets = [16, 0], sizes = [16, 1], strides = [1, 1]} : vector<48x1xf32> to vector<16x1xf32>
    %cst_24 = arith.constant dense<0xFF800000> : vector<1xf32>
    %44 = vector.multi_reduction <maximumf>, %43, %cst_24 [0] : vector<16x1xf32> to vector<1xf32>
    %45 = vector.shape_cast %44 : vector<1xf32> to vector<1x1xf32>
    %46 = vector.broadcast %45 : vector<1x1xf32> to vector<16x1xf32>
    %47 = arith.subf %43, %46 : vector<16x1xf32>
    %48 = math.exp %47 : vector<16x1xf32>
    %cst_25 = arith.constant dense<0.000000e+00> : vector<1xf32>
    %49 = vector.multi_reduction <add>, %48, %cst_25 [0] : vector<16x1xf32> to vector<1xf32>
    %50 = vector.shape_cast %49 : vector<1xf32> to vector<1x1xf32>
    %51 = tpu.reciprocal %50 {approx = true} : vector<1x1xf32> -> vector<1x1xf32>
    %52 = vector.broadcast %51 : vector<1x1xf32> to vector<16x1xf32>
    %53 = arith.mulf %48, %52 : vector<16x1xf32>
    %54 = vector.extract_strided_slice %31 {offsets = [32, 0], sizes = [16, 1], strides = [1, 1]} : vector<48x1xf32> to vector<16x1xf32>
    %cst_26 = arith.constant dense<0xFF800000> : vector<1xf32>
    %55 = vector.multi_reduction <maximumf>, %54, %cst_26 [0] : vector<16x1xf32> to vector<1xf32>
    %56 = vector.shape_cast %55 : vector<1xf32> to vector<1x1xf32>
    %57 = vector.broadcast %56 : vector<1x1xf32> to vector<16x1xf32>
    %58 = arith.subf %54, %57 : vector<16x1xf32>
    %59 = math.exp %58 : vector<16x1xf32>
    %cst_27 = arith.constant dense<0.000000e+00> : vector<1xf32>
    %60 = vector.multi_reduction <add>, %59, %cst_27 [0] : vector<16x1xf32> to vector<1xf32>
    %61 = vector.shape_cast %60 : vector<1xf32> to vector<1x1xf32>
    %62 = tpu.reciprocal %61 {approx = true} : vector<1x1xf32> -> vector<1x1xf32>
    %63 = vector.broadcast %62 : vector<1x1xf32> to vector<16x1xf32>
    %64 = arith.mulf %59, %63 : vector<16x1xf32>
    %65 = vector.broadcast %42 : vector<16x1xf32> to vector<16x256xf32>
    %66 = arith.mulf %65, %10 : vector<16x256xf32>
    %67 = vector.broadcast %53 : vector<16x1xf32> to vector<16x256xf32>
    %68 = arith.mulf %67, %11 : vector<16x256xf32>
    %69 = arith.addf %66, %68 : vector<16x256xf32>
    %70 = vector.broadcast %64 : vector<16x1xf32> to vector<16x256xf32>
    %71 = arith.mulf %70, %12 : vector<16x256xf32>
    %72 = arith.addf %69, %71 : vector<16x256xf32>
    %c0_28 = arith.constant 0 : index
    %c0_29 = arith.constant 0 : index
    %73 = vector.load %arg10[%c0_28, %c0_29] : memref<24x48xf32, #tpu.memory_space<vmem>>, vector<24x48xf32>
    %cst_30 = arith.constant dense<0.000000e+00> : vector<24x256xf32>
    %74 = tpu.matmul %73, %9, %cst_30 {dimension_numbers = #tpu.dot_dimension_numbers<[1], [0], [0], [1], [0, 0, 1, 1], [], []>} : vector<24x48xf32>, vector<48x256xf32>, vector<24x256xf32> -> vector<24x256xf32>
    %75 = vector.extract_strided_slice %74 {offsets = [0, 0], sizes = [16, 256], strides = [1, 1]} : vector<24x256xf32> to vector<16x256xf32>
    %cst_31 = arith.constant 0.000000e+00 : f32
    %76 = vector.broadcast %cst_31 : f32 to vector<16x256xf32>
    %77 = arith.maximumf %75, %76 : vector<16x256xf32>
    %78 = vector.extract_strided_slice %74 {offsets = [16, 0], sizes = [1, 256], strides = [1, 1]} : vector<24x256xf32> to vector<1x256xf32>
    %cst_32 = arith.constant 0.000000e+00 : f32
    %79 = vector.broadcast %cst_32 : f32 to vector<1x256xf32>
    %80 = arith.subf %79, %78 : vector<1x256xf32>
    %81 = math.exp %80 : vector<1x256xf32>
    %cst_33 = arith.constant 1.000000e+00 : f32
    %82 = vector.broadcast %cst_33 : f32 to vector<1x256xf32>
    %83 = arith.addf %82, %81 : vector<1x256xf32>
    %84 = tpu.reciprocal %83 {approx = true} : vector<1x256xf32> -> vector<1x256xf32>
    %85 = vector.broadcast %84 : vector<1x256xf32> to vector<16x256xf32>
    %86 = arith.mulf %77, %85 : vector<16x256xf32>
    %c0_34 = arith.constant 0 : index
    %c0_35 = arith.constant 0 : index
    %87 = vector.load %arg11[%c0_34, %c0_35] : memref<1x1xf32, #tpu.memory_space<vmem>>, vector<1x1xf32>
    %88 = vector.extract %87[0, 0] : f32 from vector<1x1xf32>
    %c0_36 = arith.constant 0 : index
    %c0_37 = arith.constant 0 : index
    %c0_38 = arith.constant 0 : index
    %89 = vector.load %arg2[%c0_36, %c0_37, %c0_38] : memref<1x16x256xf32, #tpu.memory_space<vmem>>, vector<1x16x256xf32>
    %90 = vector.shape_cast %89 : vector<1x16x256xf32> to vector<16x256xf32>
    %91 = vector.broadcast %88 : f32 to vector<16x256xf32>
    %92 = arith.mulf %91, %72 : vector<16x256xf32>
    %93 = arith.addf %90, %92 : vector<16x256xf32>
    %cst_39 = arith.constant 1.000000e+00 : f32
    %94 = arith.subf %cst_39, %88 : f32
    %95 = vector.broadcast %94 : f32 to vector<16x256xf32>
    %96 = arith.mulf %95, %86 : vector<16x256xf32>
    %97 = arith.addf %93, %96 : vector<16x256xf32>
    %cst_40 = arith.constant 0.000000e+00 : f32
    %98 = vector.broadcast %cst_40 : f32 to vector<16x256xf32>
    %99 = arith.maximumf %97, %98 : vector<16x256xf32>
    %c0_41 = arith.constant 0 : index
    %c0_42 = arith.constant 0 : index
    %c0_43 = arith.constant 0 : index
    %100 = vector.load %arg12[%c0_41, %c0_42, %c0_43] : memref<1x16x256xf32, #tpu.memory_space<vmem>>, vector<1x16x256xf32>
    %101 = vector.shape_cast %100 : vector<1x16x256xf32> to vector<16x256xf32>
    %102 = vector.shape_cast %99 : vector<16x256xf32> to vector<1x16x256xf32>
    tpu.vector_store %arg12[%c0_41, %c0_42, %c0_43], %102 {strides = array<i32>} : memref<1x16x256xf32, #tpu.memory_space<vmem>>, vector<1x16x256xf32>,
    return
  }
  func.func @transform_0(%arg0: i32) -> (i32, i32, i32) {
    %c0_i32 = arith.constant 0 : i32
    %c0_i32_0 = arith.constant 0 : i32
    %c0_i32_1 = arith.constant 0 : i32
    return %arg0, %c0_i32, %c0_i32_0 : i32, i32, i32
  }
  func.func @transform_1(%arg0: i32) -> (i32, i32, i32) {
    %c0_i32 = arith.constant 0 : i32
    %c0_i32_0 = arith.constant 0 : i32
    %c0_i32_1 = arith.constant 0 : i32
    return %arg0, %c0_i32, %c0_i32_0 : i32, i32, i32
  }
  func.func @transform_2(%arg0: i32) -> (i32, i32) {
    %c0_i32 = arith.constant 0 : i32
    %c0_i32_0 = arith.constant 0 : i32
    %c0_i32_1 = arith.constant 0 : i32
    return %c0_i32, %c0_i32_0 : i32, i32
  }
  func.func @transform_3(%arg0: i32) -> (i32, i32) {
    %c0_i32 = arith.constant 0 : i32
    %c0_i32_0 = arith.constant 0 : i32
    %c0_i32_1 = arith.constant 0 : i32
    return %c0_i32, %c0_i32_0 : i32, i32
  }
  func.func @transform_4(%arg0: i32) -> (i32, i32) {
    %c0_i32 = arith.constant 0 : i32
    %c0_i32_0 = arith.constant 0 : i32
    %c0_i32_1 = arith.constant 0 : i32
    return %c0_i32, %c0_i32_0 : i32, i32
  }
  func.func @transform_5(%arg0: i32) -> (i32, i32) {
    %c0_i32 = arith.constant 0 : i32
    %c0_i32_0 = arith.constant 0 : i32
    %c0_i32_1 = arith.constant 0 : i32
    return %c0_i32, %c0_i32_0 : i32, i32
  }
  func.func @transform_6(%arg0: i32) -> (i32, i32) {
    %c0_i32 = arith.constant 0 : i32
    %c0_i32_0 = arith.constant 0 : i32
    %c0_i32_1 = arith.constant 0 : i32
    return %c0_i32, %c0_i32_0 : i32, i32
  }
  func.func @transform_7(%arg0: i32) -> (i32, i32) {
    %c0_i32 = arith.constant 0 : i32
    %c0_i32_0 = arith.constant 0 : i32
    %c0_i32_1 = arith.constant 0 : i32
    return %c0_i32, %c0_i32_0 : i32, i32
  }
  func.func @transform_8(%arg0: i32) -> (i32, i32) {
    %c0_i32 = arith.constant 0 : i32
    %c0_i32_0 = arith.constant 0 : i32
    %c0_i32_1 = arith.constant 0 : i32
    return %c0_i32, %c0_i32_0 : i32, i32
  }
  func.func @transform_9(%arg0: i32) -> (i32, i32) {
    %c0_i32 = arith.constant 0 : i32
    %c0_i32_0 = arith.constant 0 : i32
    %c0_i32_1 = arith.constant 0 : i32
    return %c0_i32, %c0_i32_0 : i32, i32
  }
  func.func @transform_10(%arg0: i32) -> (i32, i32) {
    %c0_i32 = arith.constant 0 : i32
    %c0_i32_0 = arith.constant 0 : i32
    %c0_i32_1 = arith.constant 0 : i32
    return %c0_i32, %c0_i32_0 : i32, i32
  }
  func.func @transform_11(%arg0: i32) -> (i32, i32, i32) {
    %c0_i32 = arith.constant 0 : i32
    %c0_i32_0 = arith.constant 0 : i32
    %c0_i32_1 = arith.constant 0 : i32
    return %arg0, %c0_i32, %c0_i32_0 : i32, i32, i32
  }
}

</mosaic_0001>

<llo_original>
// kernel: tpu_custom_call.1
$region0: #{tpu_custom_call.1}
  #allocation0 [shape = 'u32[]', space=smem, size = 0x4, offset = 0x4, fixed_abs, tag = 'smem constant byte address 0x4 - core index']
  #allocation1 [shape = 'u32[72,128]{1,0:T(1,128)}', space=vmem, size = 0x9000, scoped, tag = 'internal scratch']
  #allocation2 [shape = 'f32[1,1]{1,0:T(1,128)S(1)}', space=vmem, size = 0x200, scoped, tag = 'scoped memory for tpu_custom_call.1']
  %s0 = inlined_call_operand.hbm [shape: f32[2,432,256], index: 0, kind: input, shape index: {}]
  %s1 = inlined_call_operand.vmem [shape: f32[2,16,256], index: 1, kind: input, shape index: {}]
  %s2 = inlined_call_operand.hbm [shape: f32[48,432], index: 2, kind: input, shape index: {}]
  %s3 = inlined_call_operand.vmem [shape: f32[48,1], index: 3, kind: input, shape index: {}]
  %s4 = inlined_call_operand.vmem [shape: f32[48,1], index: 4, kind: input, shape index: {}]
  %s5 = inlined_call_operand.vmem [shape: f32[8,16], index: 5, kind: input, shape index: {}]
  %s6 = inlined_call_operand.vmem [shape: f32[8,1], index: 6, kind: input, shape index: {}]
  %s7 = inlined_call_operand.vmem [shape: f32[48,8], index: 7, kind: input, shape index: {}]
  %s8 = inlined_call_operand.vmem [shape: f32[48,1], index: 8, kind: input, shape index: {}]
  %s9 = inlined_call_operand.vmem [shape: f32[24,48], index: 9, kind: input, shape index: {}]
  %s10 = inlined_call_operand.<no memory space> [shape: f32[1,1], index: 10, kind: input, shape index: {}]
  %s11 = inlined_call_operand.hbm [shape: f32[2,16,256], index: 11, kind: output, shape index: {}]
  %s12 = sld [smem:[#allocation0]]
  $region85: #{tpu_custom_call.1} parent=0
    _
  %s14 = ssub.s32 1, %s12
  %s15 = scalar_select 0, %s14, %s12
  %v16 = vstv %s10
  %17 = vst [vmem:[#allocation2] sm:$0x1] %v16
  $region1: #{tpu_custom_call.1} parent=0
    #allocation3 [shape = 'u8[884736]{0}', space=vmem, size = 0xd8000, scoped, tag = 'input window, operand 0']
    #allocation4 [shape = 's32[2]{0}', space=sflag, size = 0x8, scoped, tag = 'scoped memory for tpu_custom_call.1']
    #allocation5 [shape = 's32[2]{0}', space=sflag, size = 0x8, scoped, tag = 'scoped memory for tpu_custom_call.1']
    #allocation6 [shape = 'u8[98304]{0}', space=vmem, size = 0x18000, scoped, tag = 'input window, operand 2, single buffered']
    #allocation7 [shape = 's32[1]{0}', space=sflag, size = 0x4, scoped, tag = 'scoped memory for tpu_custom_call.1']
    #allocation8 [shape = 'u8[32768]{0}', space=vmem, size = 0x8000, scoped, tag = 'output window, operand 0']
    %18 = vsyncpa [#allocation4], 0
    %s19 = scalar_lea.sflag [#allocation4], 1
    %20 = vsyncpa %s19, 0
    %21 = vsyncpa [#allocation7], 0
    %22 = vsyncpa [#allocation5], 0
    %s23 = scalar_lea.sflag [#allocation5], 1
    %24 = vsyncpa %s23, 0
    loop: start=0, step=1, limit=4
    $region2: #{tpu_custom_call.1} parent=1 // loop_pre_header
      _
    $region3: #{tpu_custom_call.1} parent=1 // loop_header
      %s26 = sphi 0, %s30
      %p27 = scmp.ge.s32.totalorder %s26, 4
      %s36 = sphi 0, %s38
      %s39 = sphi 0, %s36
      %s40 = sphi 0, %s39
      %s56 = sphi 0, %s40
      %s62 = sphi 0, %s64
      %s65 = sphi 0, %s62
      %s66 = sphi 0, %s65
      %s82 = sphi 0, %s66
      %s86 = sphi 0, %s86
      %s88 = sphi 0, %s86
      %s89 = sphi 0, %s88
      %s103 = sphi 0, %s89
      %s107 = sphi 0, %s107
      %s109 = sphi 0, %s107
      %s110 = sphi 0, %s109
      %s124 = sphi 0, %s110
      %s128 = sphi 0, %s128
      %s130 = sphi 0, %s128
      %s131 = sphi 0, %s130
      %s145 = sphi 0, %s131
      %s149 = sphi 0, %s149
      %s151 = sphi 0, %s149
      %s152 = sphi 0, %s151
      %s166 = sphi 0, %s152
      %s170 = sphi 0, %s170
      %s172 = sphi 0, %s170
      %s173 = sphi 0, %s172
      %s187 = sphi 0, %s173
      %s191 = sphi 0, %s191
      %s193 = sphi 0, %s191
      %s194 = sphi 0, %s193
      %s208 = sphi 0, %s194
      %s212 = sphi 0, %s212
      %s214 = sphi 0, %s212
      %s215 = sphi 0, %s214
      %s229 = sphi 0, %s215
      %s233 = sphi 0, %s233
      %s235 = sphi 0, %s233
      %s236 = sphi 0, %s235
      %s250 = sphi 0, %s236
      %s254 = sphi 0, %s254
      %s256 = sphi 0, %s254
      %s257 = sphi 0, %s256
      %s271 = sphi 0, %s257
      %s277 = sphi 0, %s279
      %s280 = sphi 0, %s277
      %s281 = sphi 0, %s280
      %s297 = sphi 0, %s281
    $region4: #{tpu_custom_call.1} parent=1 // loop_header_branch
      %29 = sbr.rel (%p27) target = $region8
    $region5: #{tpu_custom_call.1} parent=1 // loop_body
      %s31 = ssub.s32 %s26, 1
      %s32 = ssub.s32 %s26, 2
      %s33 = sadd.s32 %s26, 1
      %s34 = ssub.s32 %s26, %s33
      %p35 = scmp.eq.s32.totalorder %s34, 0
      %s37 = sadd.s32 %s36, 1
      %s38 = scalar_select %p35, %s36, %s37
      %p41 = pneg %p35
      %p42 = scmp.eq.s32.totalorder %s26, 1
      %p43 = por %p41, %p42
      %p44 = scmp.ne.s32.totalorder %s36, %s39
      %p45 = scmp.eq.s32.totalorder %s26, 0
      %p46 = por %p44, %p45
      %p47 = scmp.ne.s32.totalorder %s36, %s39
      %p48 = scmp.eq.s32.totalorder %s31, 1
      %p49 = por %p47, %p48
      %p50 = scmp.ne.s32.totalorder %s39, %s40
      %p51 = scmp.eq.s32.totalorder %s31, 0
      %p52 = por %p50, %p51
      %p53 = scmp.ne.s32.totalorder %s39, %s40
      %p54 = scmp.eq.s32.totalorder %s32, 1
      %p55 = por %p53, %p54
      %p57 = scmp.ne.s32.totalorder %s40, %s56
      %p58 = scmp.eq.s32.totalorder %s32, 0
      %p59 = por %p57, %p58
      %s60 = ssub.s32 %s26, %s33
      %p61 = scmp.eq.s32.totalorder %s60, 0
      %s63 = sadd.s32 %s62, 1
      %s64 = scalar_select %p61, %s62, %s63
      %p67 = pneg %p61
      %p68 = scmp.eq.s32.totalorder %s26, 1
      %p69 = por %p67, %p68
      %p70 = scmp.ne.s32.totalorder %s62, %s65
      %p71 = scmp.eq.s32.totalorder %s26, 0
      %p72 = por %p70, %p71
      %p73 = scmp.ne.s32.totalorder %s62, %s65
      %p74 = scmp.eq.s32.totalorder %s31, 1
      %p75 = por %p73, %p74
      %p76 = scmp.ne.s32.totalorder %s65, %s66
      %p77 = scmp.eq.s32.totalorder %s31, 0
      %p78 = por %p76, %p77
      %p79 = scmp.ne.s32.totalorder %s65, %s66
      %p80 = scmp.eq.s32.totalorder %s32, 1
      %p81 = por %p79, %p80
      %p83 = scmp.ne.s32.totalorder %s66, %s82
      %p84 = scmp.eq.s32.totalorder %s32, 0
      %p85 = por %p83, %p84
      %s87 = sadd.s32 %s86, 1
      %p90 = scmp.eq.s32.totalorder %s26, 1
      %p91 = scmp.ne.s32.totalorder %s86, %s88
      %p92 = scmp.eq.s32.totalorder %s26, 0
      %p93 = por %p91, %p92
      %p94 = scmp.ne.s32.totalorder %s86, %s88
      %p95 = scmp.eq.s32.totalorder %s31, 1
      %p96 = por %p94, %p95
      %p97 = scmp.ne.s32.totalorder %s88, %s89
      %p98 = scmp.eq.s32.totalorder %s31, 0
      %p99 = por %p97, %p98
      %p100 = scmp.ne.s32.totalorder %s88, %s89
      %p101 = scmp.eq.s32.totalorder %s32, 1
      %p102 = por %p100, %p101
      %p104 = scmp.ne.s32.totalorder %s89, %s103
      %p105 = scmp.eq.s32.totalorder %s32, 0
      %p106 = por %p104, %p105
      %s108 = sadd.s32 %s107, 1
      %p111 = scmp.eq.s32.totalorder %s26, 1
      %p112 = scmp.ne.s32.totalorder %s107, %s109
      %p113 = scmp.eq.s32.totalorder %s26, 0
      %p114 = por %p112, %p113
      %p115 = scmp.ne.s32.totalorder %s107, %s109
      %p116 = scmp.eq.s32.totalorder %s31, 1
      %p117 = por %p115, %p116
      %p118 = scmp.ne.s32.totalorder %s109, %s110
      %p119 = scmp.eq.s32.totalorder %s31, 0
      %p120 = por %p118, %p119
      %p121 = scmp.ne.s32.totalorder %s109, %s110
      %p122 = scmp.eq.s32.totalorder %s32, 1
      %p123 = por %p121, %p122
      %p125 = scmp.ne.s32.totalorder %s110, %s124
      %p126 = scmp.eq.s32.totalorder %s32, 0
      %p127 = por %p125, %p126
      %s129 = sadd.s32 %s128, 1
      %p132 = scmp.eq.s32.totalorder %s26, 1
      %p133 = scmp.ne.s32.totalorder %s128, %s130
      %p134 = scmp.eq.s32.totalorder %s26, 0
      %p135 = por %p133, %p134
      %p136 = scmp.ne.s32.totalorder %s128, %s130
      %p137 = scmp.eq.s32.totalorder %s31, 1
      %p138 = por %p136, %p137
      %p139 = scmp.ne.s32.totalorder %s130, %s131
      %p140 = scmp.eq.s32.totalorder %s31, 0
      %p141 = por %p139, %p140
      %p142 = scmp.ne.s32.totalorder %s130, %s131
      %p143 = scmp.eq.s32.totalorder %s32, 1
      %p144 = por %p142, %p143
      %p146 = scmp.ne.s32.totalorder %s131, %s145
      %p147 = scmp.eq.s32.totalorder %s32, 0
      %p148 = por %p146, %p147
      %s150 = sadd.s32 %s149, 1
      %p153 = scmp.eq.s32.totalorder %s26, 1
      %p154 = scmp.ne.s32.totalorder %s149, %s151
      %p155 = scmp.eq.s32.totalorder %s26, 0
      %p156 = por %p154, %p155
      %p157 = scmp.ne.s32.totalorder %s149, %s151
      %p158 = scmp.eq.s32.totalorder %s31, 1
      %p159 = por %p157, %p158
      %p160 = scmp.ne.s32.totalorder %s151, %s152
      %p161 = scmp.eq.s32.totalorder %s31, 0
      %p162 = por %p160, %p161
      %p163 = scmp.ne.s32.totalorder %s151, %s152
      %p164 = scmp.eq.s32.totalorder %s32, 1
      %p165 = por %p163, %p164
      %p167 = scmp.ne.s32.totalorder %s152, %s166
      %p168 = scmp.eq.s32.totalorder %s32, 0
      %p169 = por %p167, %p168
      %s171 = sadd.s32 %s170, 1
      %p174 = scmp.eq.s32.totalorder %s26, 1
      %p175 = scmp.ne.s32.totalorder %s170, %s172
      %p176 = scmp.eq.s32.totalorder %s26, 0
      %p177 = por %p175, %p176
      %p178 = scmp.ne.s32.totalorder %s170, %s172
      %p179 = scmp.eq.s32.totalorder %s31, 1
      %p180 = por %p178, %p179
      %p181 = scmp.ne.s32.totalorder %s172, %s173
      %p182 = scmp.eq.s32.totalorder %s31, 0
      %p183 = por %p181, %p182
      %p184 = scmp.ne.s32.totalorder %s172, %s173
      %p185 = scmp.eq.s32.totalorder %s32, 1
      %p186 = por %p184, %p185
      %p188 = scmp.ne.s32.totalorder %s173, %s187
      %p189 = scmp.eq.s32.totalorder %s32, 0
      %p190 = por %p188, %p189
      %s192 = sadd.s32 %s191, 1
      %p195 = scmp.eq.s32.totalorder %s26, 1
      %p196 = scmp.ne.s32.totalorder %s191, %s193
      %p197 = scmp.eq.s32.totalorder %s26, 0
      %p198 = por %p196, %p197
      %p199 = scmp.ne.s32.totalorder %s191, %s193
      %p200 = scmp.eq.s32.totalorder %s31, 1
      %p201 = por %p199, %p200
      %p202 = scmp.ne.s32.totalorder %s193, %s194
      %p203 = scmp.eq.s32.totalorder %s31, 0
      %p204 = por %p202, %p203
      %p205 = scmp.ne.s32.totalorder %s193, %s194
      %p206 = scmp.eq.s32.totalorder %s32, 1
      %p207 = por %p205, %p206
      %p209 = scmp.ne.s32.totalorder %s194, %s208
      %p210 = scmp.eq.s32.totalorder %s32, 0
      %p211 = por %p209, %p210
      %s213 = sadd.s32 %s212, 1
      %p216 = scmp.eq.s32.totalorder %s26, 1
      %p217 = scmp.ne.s32.totalorder %s212, %s214
      %p218 = scmp.eq.s32.totalorder %s26, 0
      %p219 = por %p217, %p218
      %p220 = scmp.ne.s32.totalorder %s212, %s214
      %p221 = scmp.eq.s32.totalorder %s31, 1
      %p222 = por %p220, %p221
      %p223 = scmp.ne.s32.totalorder %s214, %s215
      %p224 = scmp.eq.s32.totalorder %s31, 0
      %p225 = por %p223, %p224
      %p226 = scmp.ne.s32.totalorder %s214, %s215
      %p227 = scmp.eq.s32.totalorder %s32, 1
      %p228 = por %p226, %p227
      %p230 = scmp.ne.s32.totalorder %s215, %s229
      %p231 = scmp.eq.s32.totalorder %s32, 0
      %p232 = por %p230, %p231
      %s234 = sadd.s32 %s233, 1
      %p237 = scmp.eq.s32.totalorder %s26, 1
      %p238 = scmp.ne.s32.totalorder %s233, %s235
      %p239 = scmp.eq.s32.totalorder %s26, 0
      %p240 = por %p238, %p239
      %p241 = scmp.ne.s32.totalorder %s233, %s235
      %p242 = scmp.eq.s32.totalorder %s31, 1
      %p243 = por %p241, %p242
      %p244 = scmp.ne.s32.totalorder %s235, %s236
      %p245 = scmp.eq.s32.totalorder %s31, 0
      %p246 = por %p244, %p245
      %p247 = scmp.ne.s32.totalorder %s235, %s236
      %p248 = scmp.eq.s32.totalorder %s32, 1
      %p249 = por %p247, %p248
      %p251 = scmp.ne.s32.totalorder %s236, %s250
      %p252 = scmp.eq.s32.totalorder %s32, 0
      %p253 = por %p251, %p252
      %s255 = sadd.s32 %s254, 1
      %p258 = scmp.eq.s32.totalorder %s26, 1
      %p259 = scmp.ne.s32.totalorder %s254, %s256
      %p260 = scmp.eq.s32.totalorder %s26, 0
      %p261 = por %p259, %p260
      %p262 = scmp.ne.s32.totalorder %s254, %s256
      %p263 = scmp.eq.s32.totalorder %s31, 1
      %p264 = por %p262, %p263
      %p265 = scmp.ne.s32.totalorder %s256, %s257
      %p266 = scmp.eq.s32.totalorder %s31, 0
      %p267 = por %p265, %p266
      %p268 = scmp.ne.s32.totalorder %s256, %s257
      %p269 = scmp.eq.s32.totalorder %s32, 1
      %p270 = por %p268, %p269
      %p272 = scmp.ne.s32.totalorder %s257, %s271
      %p273 = scmp.eq.s32.totalorder %s32, 0
      %p274 = por %p272, %p273
      %s275 = ssub.s32 %s26, %s33
      %p276 = scmp.eq.s32.totalorder %s275, 0
      %s278 = sadd.s32 %s277, 1
      %s279 = scalar_select %p276, %s277, %s278
      %p282 = pneg %p276
      %p283 = scmp.eq.s32.totalorder %s26, 1
      %p284 = por %p282, %p283
      %p285 = scmp.ne.s32.totalorder %s277, %s280
      %p286 = scmp.eq.s32.totalorder %s26, 0
      %p287 = por %p285, %p286
      %p288 = scmp.ne.s32.totalorder %s277, %s280
      %p289 = scmp.eq.s32.totalorder %s31, 1
      %p290 = por %p288, %p289
      %p291 = scmp.ne.s32.totalorder %s280, %s281
      %p292 = scmp.eq.s32.totalorder %s31, 0
      %p293 = por %p291, %p292
      %p294 = scmp.ne.s32.totalorder %s280, %s281
      %p295 = scmp.eq.s32.totalorder %s32, 1
      %p296 = por %p294, %p295
      %p298 = scmp.ne.s32.totalorder %s281, %s297
      %p299 = scmp.eq.s32.totalorder %s32, 0
      %p300 = por %p298, %p299
      %p301 = scmp.le.s32.totalorder 1, %s26
      %p302 = scmp.lt.s32.totalorder %s26, 3
      %p303 = pnand %p301, %p302
      %p304 = pneg %p303
      // Predicated region
      $region9: #{tpu_custom_call.1} parent=5 // pred_check
        _
      $region10: #{tpu_custom_call.1} parent=5 // pred_check_branch
        %306 = sbr.rel (%p303) target = $region12
      $region11: #{tpu_custom_call.1} parent=5 // pred_region
        %s307 = ssub.s32 %s26, 1
        // Predicated region
        $region13: #{tpu_custom_call.1} parent=11 // pred_check
          %p308 = pneg %p99
        $region14: #{tpu_custom_call.1} parent=11 // pred_check_branch
          %310 = sbr.rel (%p308) target = $region16
        $region15: #{tpu_custom_call.1} parent=11 // pred_region
          %312 = vsyncadd [#allocation7], 0
          %s313 = sshll.u32 %s2, 4
          %s314 = int_to_ptr.hbm [resolvable:$true] %s313
          %s315 = sshll.u32 [#allocation6], 4
          %s316 = int_to_ptr.vmem [resolvable:$true] %s315
          %321 = dma.hbm_to_vmem [thread:$0]  %s314, 3072, %s316, [#allocation7], 512, 512, 32
        $region16: #{tpu_custom_call.1} parent=11 // pred_fallthru
          _
        // Predicated region
        $region17: #{tpu_custom_call.1} parent=11 // pred_check
          %p322 = pneg %p120
        $region18: #{tpu_custom_call.1} parent=11 // pred_check_branch
          %324 = sbr.rel (%p322) target = $region20
        $region19: #{tpu_custom_call.1} parent=11 // pred_region
          _
        $region20: #{tpu_custom_call.1} parent=11 // pred_fallthru
          _
        // Predicated region
        $region21: #{tpu_custom_call.1} parent=11 // pred_check
          %p325 = pneg %p141
        $region22: #{tpu_custom_call.1} parent=11 // pred_check_branch
          %327 = sbr.rel (%p325) target = $region24
        $region23: #{tpu_custom_call.1} parent=11 // pred_region
          _
        $region24: #{tpu_custom_call.1} parent=11 // pred_fallthru
          _
        // Predicated region
        $region25: #{tpu_custom_call.1} parent=11 // pred_check
          %p328 = pneg %p162
        $region26: #{tpu_custom_call.1} parent=11 // pred_check_branch
          %330 = sbr.rel (%p328) target = $region28
        $region27: #{tpu_custom_call.1} parent=11 // pred_region
          _
        $region28: #{tpu_custom_call.1} parent=11 // pred_fallthru
          _
        // Predicated region
        $region29: #{tpu_custom_call.1} parent=11 // pred_check
          %p331 = pneg %p183
        $region30: #{tpu_custom_call.1} parent=11 // pred_check_branch
          %333 = sbr.rel (%p331) target = $region32
        $region31: #{tpu_custom_call.1} parent=11 // pred_region
          _
        $region32: #{tpu_custom_call.1} parent=11 // pred_fallthru
          _
        // Predicated region
        $region33: #{tpu_custom_call.1} parent=11 // pred_check
          %p334 = pneg %p204
        $region34: #{tpu_custom_call.1} parent=11 // pred_check_branch
          %336 = sbr.rel (%p334) target = $region36
        $region35: #{tpu_custom_call.1} parent=11 // pred_region
          _
        $region36: #{tpu_custom_call.1} parent=11 // pred_fallthru
          _
        // Predicated region
        $region37: #{tpu_custom_call.1} parent=11 // pred_check
          %p337 = pneg %p225
        $region38: #{tpu_custom_call.1} parent=11 // pred_check_branch
          %339 = sbr.rel (%p337) target = $region40
        $region39: #{tpu_custom_call.1} parent=11 // pred_region
          _
        $region40: #{tpu_custom_call.1} parent=11 // pred_fallthru
          _
        // Predicated region
        $region41: #{tpu_custom_call.1} parent=11 // pred_check
          %p340 = pneg %p246
        $region42: #{tpu_custom_call.1} parent=11 // pred_check_branch
          %342 = sbr.rel (%p340) target = $region44
        $region43: #{tpu_custom_call.1} parent=11 // pred_region
          _
        $region44: #{tpu_custom_call.1} parent=11 // pred_fallthru
          _
        // Predicated region
        $region45: #{tpu_custom_call.1} parent=11 // pred_check
          %p343 = pneg %p267
        $region46: #{tpu_custom_call.1} parent=11 // pred_check_branch
          %345 = sbr.rel (%p343) target = $region48
        $region47: #{tpu_custom_call.1} parent=11 // pred_region
          _
        $region48: #{tpu_custom_call.1} parent=11 // pred_fallthru
          _
      $region12: #{tpu_custom_call.1} parent=5 // pred_fallthru
        _
      %p346 = scmp.lt.s32.totalorder %s26, 2
      // Predicated region
      $region49: #{tpu_custom_call.1} parent=5 // pred_check
        %p347 = pneg %p346
      $region50: #{tpu_custom_call.1} parent=5 // pred_check_branch
        %349 = sbr.rel (%p347) target = $region52
      $region51: #{tpu_custom_call.1} parent=5 // pred_region
        // Predicated region
        $region53: #{tpu_custom_call.1} parent=51 // pred_check
          %p350 = pneg %p46
        $region54: #{tpu_custom_call.1} parent=51 // pred_check_branch
          %352 = sbr.rel (%p350) target = $region56
        $region55: #{tpu_custom_call.1} parent=51 // pred_region
          %s353 = sand.u32 %s36, 1
          %s354 = scalar_lea.sflag [#allocation4], %s353
          %s355 = sand.u32 %s36, 1
          %s356 = smul.addr %s355, 864
          %s357 = scalar_lea.vmem [#allocation3], %s356
          %359 = vsyncadd %s354, 0
          %s360 = smul.addr %s26, 108
          %s361 = smul.addr %s360, 8
          %s362 = scalar_lea.hbm %s0, %s361
          %s363 = sshll.u32 %s362, 4
          %s364 = int_to_ptr.hbm [resolvable:$true] %s363
          %s365 = sshll.u32 %s357, 4
          %s366 = int_to_ptr.vmem [resolvable:$true] %s365
          %371 = dma.hbm_to_vmem [thread:$0]  %s364, 13824, %s366, %s354, 256, 256, 16
        $region56: #{tpu_custom_call.1} parent=51 // pred_fallthru
          _
        // Predicated region
        $region57: #{tpu_custom_call.1} parent=51 // pred_check
          %p372 = pneg %p72
        $region58: #{tpu_custom_call.1} parent=51 // pred_check_branch
          %374 = sbr.rel (%p372) target = $region60
        $region59: #{tpu_custom_call.1} parent=51 // pred_region
          %p375 = scmp.lt.s32.totalorder %s26, 1
          %s376 = scalar_select %p375, %s26, 1
          %s377 = smul.addr %s376, 4
          %s378 = smul.addr %s377, 8
          %s379 = scalar_lea.vmem %s1, %s378
        $region60: #{tpu_custom_call.1} parent=51 // pred_fallthru
          _
      $region52: #{tpu_custom_call.1} parent=5 // pred_fallthru
        _
      %p380 = scmp.le.s32.totalorder 1, %s26
      %p381 = scmp.lt.s32.totalorder %s26, 3
      %p382 = pnand %p380, %p381
      %p383 = pneg %p382
      // Predicated region
      $region61: #{tpu_custom_call.1} parent=5 // pred_check
        _
      $region62: #{tpu_custom_call.1} parent=5 // pred_check_branch
        %385 = sbr.rel (%p382) target = $region64
      $region63: #{tpu_custom_call.1} parent=5 // pred_region
        %s386 = ssub.s32 %s26, 1
        %s387 = sand.u32 %s39, 1
        %s388 = scalar_lea.sflag [#allocation4], %s387
        %s389 = sand.u32 %s39, 1
        %s390 = smul.addr %s389, 864
        %s391 = scalar_lea.vmem [#allocation3], %s390
        // Predicated region
        $region65: #{tpu_custom_call.1} parent=63 // pred_check
          %p392 = pneg %p52
        $region66: #{tpu_custom_call.1} parent=63 // pred_check_branch
          %394 = sbr.rel (%p392) target = $region68
        $region67: #{tpu_custom_call.1} parent=63 // pred_region
          %396 = dma.done %s388, 13824
        $region68: #{tpu_custom_call.1} parent=63 // pred_fallthru
          _
        // Predicated region
        $region69: #{tpu_custom_call.1} parent=63 // pred_check
          %p397 = pneg %p99
        $region70: #{tpu_custom_call.1} parent=63 // pred_check_branch
          %399 = sbr.rel (%p397) target = $region72
        $region71: #{tpu_custom_call.1} parent=63 // pred_region
          %401 = dma.done [#allocation7], 3072
        $region72: #{tpu_custom_call.1} parent=63 // pred_fallthru
          _
        %s402 = sand.u32 %s39, 1
        %s403 = scalar_lea.sflag [#allocation4], %s402
        %s404 = sand.u32 %s39, 1
        %s405 = smul.addr %s404, 864
        %s406 = scalar_lea.vmem [#allocation3], %s405
        %p407 = pneg %p52
        %p408 = pneg %p49
        %p409 = scmp.lt.s32.totalorder %s31, 1
        %s410 = scalar_select %p409, %s31, 1
        %s411 = smul.addr %s410, 4
        %s412 = smul.addr %s411, 8
        %s413 = scalar_lea.vmem %s1, %s412
        %p414 = pneg %p78
        %p415 = pneg %p75
        %p416 = pneg %p99
        %p417 = pneg %p96
        %p418 = pneg %p120
        %p419 = pneg %p117
        %p420 = pneg %p141
        %p421 = pneg %p138
        %p422 = pneg %p162
        %p423 = pneg %p159
        %p424 = pneg %p183
        %p425 = pneg %p180
        %p426 = pneg %p204
        %p427 = pneg %p201
        %p428 = pneg %p225
        %p429 = pneg %p222
        %p430 = pneg %p246
        %p431 = pneg %p243
        %p432 = pneg %p267
        %p433 = pneg %p264
        %p434 = pneg %p293
        %p435 = pneg %p290
        %s436 = sand.u32 %s280, 1
        %s437 = scalar_lea.sflag [#allocation5], %s436
        %s438 = sand.u32 %s280, 1
        %s439 = smul.addr %s438, 32
        %s440 = scalar_lea.vmem [#allocation8], %s439
        %p441 = scmp.lt.s32.totalorder %s31, 1
        %s442 = scalar_select %p441, %s31, 1
        %s443 = smul.addr %s442, 4
        %s444 = smul.addr %s443, 8
        %s445 = scalar_lea.vmem %s1, %s444
        %v446 = vld [vmem:[#allocation6] sm:$0xff]
        %v447 = vld [vmem:[#allocation6 + $0x8] sm:$0xff]
        %v448 = vld [vmem:[#allocation6 + $0x10] sm:$0xff]
        %v449 = vld [vmem:[#allocation6 + $0x18] sm:$0xff]
        %v450 = vld [vmem:[#allocation6 + $0x20] sm:$0xff]
        %v451 = vld [vmem:[#allocation6 + $0x28] sm:$0xff]
        %v452 = vld [vmem:[#allocation6 + $0x30] sm:$0xff]
        %v453 = vld [vmem:[#allocation6 + $0x38] sm:$0xff]
        %v454 = vld [vmem:[#allocation6 + $0x40] sm:$0xff]
        %v455 = vld [vmem:[#allocation6 + $0x48] sm:$0xff]
        %v456 = vld [vmem:[#allocation6 + $0x50] sm:$0xff]
        %v457 = vld [vmem:[#allocation6 + $0x58] sm:$0xff]
        %v458 = vld [vmem:[#allocation6 + $0x60] sm:$0xff]
        %v459 = vld [vmem:[#allocation6 + $0x68] sm:$0xff]
        %v460 = vld [vmem:[#allocation6 + $0x70] sm:$0xff]
        %v461 = vld [vmem:[#allocation6 + $0x78] sm:$0xff]
        %v462 = vld [vmem:[#allocation6 + $0x80] sm:$0xff]
        %v463 = vld [vmem:[#allocation6 + $0x88] sm:$0xff]
        %v464 = vld [vmem:[#allocation6 + $0x90] sm:$0xff]
        %v465 = vld [vmem:[#allocation6 + $0x98] sm:$0xff]
        %v466 = vld [vmem:[#allocation6 + $0xa0] sm:$0xff]
        %v467 = vld [vmem:[#allocation6 + $0xa8] sm:$0xff]
        %v468 = vld [vmem:[#allocation6 + $0xb0] sm:$0xff]
        %v469 = vld [vmem:[#allocation6 + $0xb8] sm:$0xff]
        %v470 = vld [vmem:[%s391] sm:$0xff]
        %v471 = vld [vmem:[%s391 + $0x8] sm:$0xff]
        %v472 = vld [vmem:[%s391 + $0x10] sm:$0xff]
        %v473 = vld [vmem:[%s391 + $0x18] sm:$0xff]
        %v474 = vld [vmem:[%s391 + $0x20] sm:$0xff]
        %v475 = vld [vmem:[%s391 + $0x28] sm:$0xff]
        %v476 = vld [vmem:[%s391 + $0x30] sm:$0xff]
        %v477 = vld [vmem:[%s391 + $0x38] sm:$0xff]
        %v478 = vld [vmem:[%s391 + $0x40] sm:$0xff]
        %v479 = vld [vmem:[%s391 + $0x48] sm:$0xff]
        %v480 = vld [vmem:[%s391 + $0x50] sm:$0xff]
        %v481 = vld [vmem:[%s391 + $0x58] sm:$0xff]
        %v482 = vld [vmem:[%s391 + $0x60] sm:$0xff]
        %v483 = vld [vmem:[%s391 + $0x68] sm:$0xff]
        %v484 = vld [vmem:[%s391 + $0x70] sm:$0xff]
        %v485 = vld [vmem:[%s391 + $0x78] sm:$0xff]
        %v486 = vld [vmem:[%s391 + $0x80] sm:$0xff]
        %v487 = vld [vmem:[%s391 + $0x88] sm:$0xff]
        %v488 = vld [vmem:[%s391 + $0x90] sm:$0xff]
        %v489 = vld [vmem:[%s391 + $0x98] sm:$0xff]
        %v490 = vld [vmem:[%s391 + $0xa0] sm:$0xff]
        %v491 = vld [vmem:[%s391 + $0xa8] sm:$0xff]
        %v492 = vld [vmem:[%s391 + $0xb0] sm:$0xff]
        %v493 = vld [vmem:[%s391 + $0xb8] sm:$0xff]
        %v494 = vld [vmem:[%s391 + $0xc0] sm:$0xff]
        %v495 = vld [vmem:[%s391 + $0xc8] sm:$0xff]
        %v496 = vld [vmem:[%s391 + $0xd0] sm:$0xff]
        %v497 = vld [vmem:[%s391 + $0xd8] sm:$0xff]
        %v498 = vld [vmem:[%s391 + $0xe0] sm:$0xff]
        %v499 = vld [vmem:[%s391 + $0xe8] sm:$0xff]
        %v500 = vld [vmem:[%s391 + $0xf0] sm:$0xff]
        %v501 = vld [vmem:[%s391 + $0xf8] sm:$0xff]
        %v502 = vld [vmem:[%s391 + $0x100] sm:$0xff]
        %v503 = vld [vmem:[%s391 + $0x108] sm:$0xff]
        %v504 = vld [vmem:[%s391 + $0x110] sm:$0xff]
        %v505 = vld [vmem:[%s391 + $0x118] sm:$0xff]
        %v506 = vld [vmem:[%s391 + $0x120] sm:$0xff]
        %v507 = vld [vmem:[%s391 + $0x128] sm:$0xff]
        %v508 = vld [vmem:[%s391 + $0x130] sm:$0xff]
        %v509 = vld [vmem:[%s391 + $0x138] sm:$0xff]
        %v510 = vld [vmem:[%s391 + $0x140] sm:$0xff]
        %v511 = vld [vmem:[%s391 + $0x148] sm:$0xff]
        %v512 = vld [vmem:[%s391 + $0x150] sm:$0xff]
        %v513 = vld [vmem:[%s391 + $0x158] sm:$0xff]
        %v514 = vld [vmem:[%s391 + $0x160] sm:$0xff]
        %v515 = vld [vmem:[%s391 + $0x168] sm:$0xff]
        %v516 = vld [vmem:[%s391 + $0x170] sm:$0xff]
        %v517 = vld [vmem:[%s391 + $0x178] sm:$0xff]
        %v518 = vld [vmem:[%s391 + $0x180] sm:$0xff]
        %v519 = vld [vmem:[%s391 + $0x188] sm:$0xff]
        %v520 = vld [vmem:[%s391 + $0x190] sm:$0xff]
        %v521 = vld [vmem:[%s391 + $0x198] sm:$0xff]
        %v522 = vld [vmem:[%s391 + $0x1a0] sm:$0xff]
        %v523 = vld [vmem:[%s391 + $0x1a8] sm:$0xff]
        %v524 = vld [vmem:[%s391 + $0x1b0] sm:$0xff]
        %v525 = vld [vmem:[%s391 + $0x1b8] sm:$0xff]
        %v526 = vld [vmem:[%s391 + $0x1c0] sm:$0xff]
        %v527 = vld [vmem:[%s391 + $0x1c8] sm:$0xff]
        %v528 = vld [vmem:[%s391 + $0x1d0] sm:$0xff]
        %v529 = vld [vmem:[%s391 + $0x1d8] sm:$0xff]
        %v530 = vld [vmem:[%s391 + $0x1e0] sm:$0xff]
        %v531 = vld [vmem:[%s391 + $0x1e8] sm:$0xff]
        %v532 = vld [vmem:[%s391 + $0x1f0] sm:$0xff]
        %v533 = vld [vmem:[%s391 + $0x1f8] sm:$0xff]
        %v534 = vld [vmem:[%s391 + $0x200] sm:$0xff]
        %v535 = vld [vmem:[%s391 + $0x208] sm:$0xff]
        %v536 = vld [vmem:[%s391 + $0x210] sm:$0xff]
        %v537 = vld [vmem:[%s391 + $0x218] sm:$0xff]
        %v538 = vld [vmem:[%s391 + $0x220] sm:$0xff]
        %v539 = vld [vmem:[%s391 + $0x228] sm:$0xff]
        %v540 = vld [vmem:[%s391 + $0x230] sm:$0xff]
        %v541 = vld [vmem:[%s391 + $0x238] sm:$0xff]
        %v542 = vld [vmem:[%s391 + $0x240] sm:$0xff]
        %v543 = vld [vmem:[%s391 + $0x248] sm:$0xff]
        %v544 = vld [vmem:[%s391 + $0x250] sm:$0xff]
        %v545 = vld [vmem:[%s391 + $0x258] sm:$0xff]
        %v546 = vld [vmem:[%s391 + $0x260] sm:$0xff]
        %v547 = vld [vmem:[%s391 + $0x268] sm:$0xff]
        %v548 = vld [vmem:[%s391 + $0x270] sm:$0xff]
        %v549 = vld [vmem:[%s391 + $0x278] sm:$0xff]
        %v550 = vld [vmem:[%s391 + $0x280] sm:$0xff]
        %v551 = vld [vmem:[%s391 + $0x288] sm:$0xff]
        %v552 = vld [vmem:[%s391 + $0x290] sm:$0xff]
        %v553 = vld [vmem:[%s391 + $0x298] sm:$0xff]
        %v554 = vld [vmem:[%s391 + $0x2a0] sm:$0xff]
        %v555 = vld [vmem:[%s391 + $0x2a8] sm:$0xff]
        %v556 = vld [vmem:[%s391 + $0x2b0] sm:$0xff]
        %v557 = vld [vmem:[%s391 + $0x2b8] sm:$0xff]
        %v558 = vld [vmem:[%s391 + $0x2c0] sm:$0xff]
        %v559 = vld [vmem:[%s391 + $0x2c8] sm:$0xff]
        %v560 = vld [vmem:[%s391 + $0x2d0] sm:$0xff]
        %v561 = vld [vmem:[%s391 + $0x2d8] sm:$0xff]
        %v562 = vld [vmem:[%s391 + $0x2e0] sm:$0xff]
        %v563 = vld [vmem:[%s391 + $0x2e8] sm:$0xff]
        %v564 = vld [vmem:[%s391 + $0x2f0] sm:$0xff]
        %v565 = vld [vmem:[%s391 + $0x2f8] sm:$0xff]
        %v566 = vld [vmem:[%s391 + $0x300] sm:$0xff]
        %v567 = vld [vmem:[%s391 + $0x308] sm:$0xff]
        %v568 = vld [vmem:[%s391 + $0x310] sm:$0xff]
        %v569 = vld [vmem:[%s391 + $0x318] sm:$0xff]
        %v570 = vld [vmem:[%s391 + $0x320] sm:$0xff]
        %v571 = vld [vmem:[%s391 + $0x328] sm:$0xff]
        %v572 = vld [vmem:[%s391 + $0x330] sm:$0xff]
        %v573 = vld [vmem:[%s391 + $0x338] sm:$0xff]
        %v574 = vld [vmem:[%s391 + $0x340] sm:$0xff]
        %v575 = vld [vmem:[%s391 + $0x348] sm:$0xff]
        %v576 = vld [vmem:[%s391 + $0x350] sm:$0xff]
        %v577 = vld [vmem:[%s391 + $0x358] sm:$0xff]
        %vm578 = vcmask 392192
        %v580 = vsel %vm578, %v449, 0
        %v583 = vsel %vm578, %v453, 0
        %v586 = vsel %vm578, %v457, 0
        %v589 = vsel %vm578, %v461, 0
        %v592 = vsel %vm578, %v465, 0
        %v595 = vsel %vm578, %v469, 0
        %597 = vmatpush.msra.mxu0 %v500
        %598 = vmatpush.msra.mxu0 %v498
        %599 = vmatpush.msra.mxu0 %v496
        %600 = vmatpush.msra.mxu0 %v494
        %601 = vmatpush.msra.mxu0 %v492
        %602 = vmatpush.msra.mxu0 %v490
        %603 = vmatpush.msra.mxu0 %v488
        %604 = vmatpush.msra.mxu0 %v486
        %605 = vmatpush.msra.mxu0 %v484
        %606 = vmatpush.msra.mxu0 %v482
        %607 = vmatpush.msra.mxu0 %v480
        %608 = vmatpush.msra.mxu0 %v478
        %609 = vmatpush.msra.mxu0 %v476
        %610 = vmatpush.msra.mxu0 %v474
        %611 = vmatpush.msra.mxu0 %v472
        %612 = vmatpush.msra.mxu0 %v470
        %613 = vmatmul.f32.gmra.mxu0 %v446
        %v614 = vpop.f32.mrf.mxu0
        %v615 = vadd.f32 0.0, %v614
        %616 = vmatmul.f32.gmra.mxu0 %v450
        %v617 = vpop.f32.mrf.mxu0
        %v618 = vadd.f32 0.0, %v617
        %619 = vmatmul.f32.gmra.mxu0 %v454
        %v620 = vpop.f32.mrf.mxu0
        %v621 = vadd.f32 0.0, %v620
        %622 = vmatmul.f32.gmra.mxu0 %v458
        %v623 = vpop.f32.mrf.mxu0
        %v624 = vadd.f32 0.0, %v623
        %625 = vmatmul.f32.gmra.mxu0 %v462
        %v626 = vpop.f32.mrf.mxu0
        %v627 = vadd.f32 0.0, %v626
        %628 = vmatmul.f32.gmra.mxu0 %v466
        %v629 = vpop.f32.mrf.mxu0
        %v630 = vadd.f32 0.0, %v629
        %631 = vdwg.mxu0
        %632 = vmatpush.msra.mxu0 %v532
        %633 = vmatpush.msra.mxu0 %v530
        %634 = vmatpush.msra.mxu0 %v528
        %635 = vmatpush.msra.mxu0 %v526
        %636 = vmatpush.msra.mxu0 %v524
        %637 = vmatpush.msra.mxu0 %v522
        %638 = vmatpush.msra.mxu0 %v520
        %639 = vmatpush.msra.mxu0 %v518
        %640 = vmatpush.msra.mxu0 %v516
        %641 = vmatpush.msra.mxu0 %v514
        %642 = vmatpush.msra.mxu0 %v512
        %643 = vmatpush.msra.mxu0 %v510
        %644 = vmatpush.msra.mxu0 %v508
        %645 = vmatpush.msra.mxu0 %v506
        %646 = vmatpush.msra.mxu0 %v504
        %647 = vmatpush.msra.mxu0 %v502
        %648 = vmatmul.f32.gmra.mxu0 %v447
        %v649 = vpop.f32.mrf.mxu0
        %v650 = vadd.f32 %v615, %v649
        %651 = vmatmul.f32.gmra.mxu0 %v451
        %v652 = vpop.f32.mrf.mxu0
        %v653 = vadd.f32 %v618, %v652
        %654 = vmatmul.f32.gmra.mxu0 %v455
        %v655 = vpop.f32.mrf.mxu0
        %v656 = vadd.f32 %v621, %v655
        %657 = vmatmul.f32.gmra.mxu0 %v459
        %v658 = vpop.f32.mrf.mxu0
        %v659 = vadd.f32 %v624, %v658
        %660 = vmatmul.f32.gmra.mxu0 %v463
        %v661 = vpop.f32.mrf.mxu0
        %v662 = vadd.f32 %v627, %v661
        %663 = vmatmul.f32.gmra.mxu0 %v467
        %v664 = vpop.f32.mrf.mxu0
        %v665 = vadd.f32 %v630, %v664
        %666 = vdwg.mxu0
        %667 = vmatpush.msra.mxu0 %v564
        %668 = vmatpush.msra.mxu0 %v562
        %669 = vmatpush.msra.mxu0 %v560
        %670 = vmatpush.msra.mxu0 %v558
        %671 = vmatpush.msra.mxu0 %v556
        %672 = vmatpush.msra.mxu0 %v554
        %673 = vmatpush.msra.mxu0 %v552
        %674 = vmatpush.msra.mxu0 %v550
        %675 = vmatpush.msra.mxu0 %v548
        %676 = vmatpush.msra.mxu0 %v546
        %677 = vmatpush.msra.mxu0 %v544
        %678 = vmatpush.msra.mxu0 %v542
        %679 = vmatpush.msra.mxu0 %v540
        %680 = vmatpush.msra.mxu0 %v538
        %681 = vmatpush.msra.mxu0 %v536
        %682 = vmatpush.msra.mxu0 %v534
        %683 = vmatmul.f32.gmra.mxu0 %v448
        %v684 = vpop.f32.mrf.mxu0
        %v685 = vadd.f32 %v650, %v684
        %686 = vmatmul.f32.gmra.mxu0 %v452
        %v687 = vpop.f32.mrf.mxu0
        %v688 = vadd.f32 %v653, %v687
        %689 = vmatmul.f32.gmra.mxu0 %v456
        %v690 = vpop.f32.mrf.mxu0
        %v691 = vadd.f32 %v656, %v690
        %692 = vmatmul.f32.gmra.mxu0 %v460
        %v693 = vpop.f32.mrf.mxu0
        %v694 = vadd.f32 %v659, %v693
        %695 = vmatmul.f32.gmra.mxu0 %v464
        %v696 = vpop.f32.mrf.mxu0
        %v697 = vadd.f32 %v662, %v696
        %698 = vmatmul.f32.gmra.mxu0 %v468
        %v699 = vpop.f32.mrf.mxu0
        %v700 = vadd.f32 %v665, %v699
        %701 = vdwg.mxu0
        %702 = vmatpush.msra.mxu0 0.0
        %703 = vmatpush.msra.mxu0 0.0
        %704 = vmatpush.msra.mxu0 0.0
        %705 = vmatpush.msra.mxu0 0.0
        %706 = vmatpush.msra.mxu0 0.0
        %707 = vmatpush.msra.mxu0 0.0
        %708 = vmatpush.msra.mxu0 0.0
        %709 = vmatpush.msra.mxu0 0.0
        %710 = vmatpush.msra.mxu0 0.0
        %711 = vmatpush.msra.mxu0 0.0
        %712 = vmatpush.msra.mxu0 %v576
        %713 = vmatpush.msra.mxu0 %v574
        %714 = vmatpush.msra.mxu0 %v572
        %715 = vmatpush.msra.mxu0 %v570
        %716 = vmatpush.msra.mxu0 %v568
        %717 = vmatpush.msra.mxu0 %v566
        %718 = vmatmul.f32.gmra.mxu0 %v580
        %v719 = vpop.f32.mrf.mxu0
        %v720 = vadd.f32 %v685, %v719
        %721 = vmatmul.f32.gmra.mxu0 %v583
        %v722 = vpop.f32.mrf.mxu0
        %v723 = vadd.f32 %v688, %v722
        %724 = vmatmul.f32.gmra.mxu0 %v586
        %v725 = vpop.f32.mrf.mxu0
        %v726 = vadd.f32 %v691, %v725
        %727 = vmatmul.f32.gmra.mxu0 %v589
        %v728 = vpop.f32.mrf.mxu0
        %v729 = vadd.f32 %v694, %v728
        %730 = vmatmul.f32.gmra.mxu0 %v592
        %v731 = vpop.f32.mrf.mxu0
        %v732 = vadd.f32 %v697, %v731
        %733 = vmatmul.f32.gmra.mxu0 %v595
        %v734 = vpop.f32.mrf.mxu0
        %v735 = vadd.f32 %v700, %v734
        %736 = vdwg.mxu0
        %737 = vmatpush.msra.mxu0 %v501
        %738 = vmatpush.msra.mxu0 %v499
        %739 = vmatpush.msra.mxu0 %v497
        %740 = vmatpush.msra.mxu0 %v495
        %741 = vmatpush.msra.mxu0 %v493
        %742 = vmatpush.msra.mxu0 %v491
        %743 = vmatpush.msra.mxu0 %v489
        %744 = vmatpush.msra.mxu0 %v487
        %745 = vmatpush.msra.mxu0 %v485
        %746 = vmatpush.msra.mxu0 %v483
        %747 = vmatpush.msra.mxu0 %v481
        %748 = vmatpush.msra.mxu0 %v479
        %749 = vmatpush.msra.mxu0 %v477
        %750 = vmatpush.msra.mxu0 %v475
        %751 = vmatpush.msra.mxu0 %v473
        %752 = vmatpush.msra.mxu0 %v471
        %753 = vmatmul.f32.gmra.mxu0 %v446
        %v754 = vpop.f32.mrf.mxu0
        %v755 = vadd.f32 0.0, %v754
        %756 = vmatmul.f32.gmra.mxu0 %v450
        %v757 = vpop.f32.mrf.mxu0
        %v758 = vadd.f32 0.0, %v757
        %759 = vmatmul.f32.gmra.mxu0 %v454
        %v760 = vpop.f32.mrf.mxu0
        %v761 = vadd.f32 0.0, %v760
        %762 = vmatmul.f32.gmra.mxu0 %v458
        %v763 = vpop.f32.mrf.mxu0
        %v764 = vadd.f32 0.0, %v763
        %765 = vmatmul.f32.gmra.mxu0 %v462
        %v766 = vpop.f32.mrf.mxu0
        %v767 = vadd.f32 0.0, %v766
        %768 = vmatmul.f32.gmra.mxu0 %v466
        %v769 = vpop.f32.mrf.mxu0
        %v770 = vadd.f32 0.0, %v769
        %771 = vdwg.mxu0
        %772 = vmatpush.msra.mxu0 %v533
        %773 = vmatpush.msra.mxu0 %v531
        %774 = vmatpush.msra.mxu0 %v529
        %775 = vmatpush.msra.mxu0 %v527
        %776 = vmatpush.msra.mxu0 %v525
        %777 = vmatpush.msra.mxu0 %v523
        %778 = vmatpush.msra.mxu0 %v521
        %779 = vmatpush.msra.mxu0 %v519
        %780 = vmatpush.msra.mxu0 %v517
        %781 = vmatpush.msra.mxu0 %v515
        %782 = vmatpush.msra.mxu0 %v513
        %783 = vmatpush.msra.mxu0 %v511
        %784 = vmatpush.msra.mxu0 %v509
        %785 = vmatpush.msra.mxu0 %v507
        %786 = vmatpush.msra.mxu0 %v505
        %787 = vmatpush.msra.mxu0 %v503
        %788 = vmatmul.f32.gmra.mxu0 %v447
        %v789 = vpop.f32.mrf.mxu0
        %v790 = vadd.f32 %v755, %v789
        %791 = vmatmul.f32.gmra.mxu0 %v451
        %v792 = vpop.f32.mrf.mxu0
        %v793 = vadd.f32 %v758, %v792
        %794 = vmatmul.f32.gmra.mxu0 %v455
        %v795 = vpop.f32.mrf.mxu0
        %v796 = vadd.f32 %v761, %v795
        %797 = vmatmul.f32.gmra.mxu0 %v459
        %v798 = vpop.f32.mrf.mxu0
        %v799 = vadd.f32 %v764, %v798
        %800 = vmatmul.f32.gmra.mxu0 %v463
        %v801 = vpop.f32.mrf.mxu0
        %v802 = vadd.f32 %v767, %v801
        %803 = vmatmul.f32.gmra.mxu0 %v467
        %v804 = vpop.f32.mrf.mxu0
        %v805 = vadd.f32 %v770, %v804
        %806 = vdwg.mxu0
        %807 = vmatpush.msra.mxu0 %v565
        %808 = vmatpush.msra.mxu0 %v563
        %809 = vmatpush.msra.mxu0 %v561
        %810 = vmatpush.msra.mxu0 %v559
        %811 = vmatpush.msra.mxu0 %v557
        %812 = vmatpush.msra.mxu0 %v555
        %813 = vmatpush.msra.mxu0 %v553
        %814 = vmatpush.msra.mxu0 %v551
        %815 = vmatpush.msra.mxu0 %v549
        %816 = vmatpush.msra.mxu0 %v547
        %817 = vmatpush.msra.mxu0 %v545
        %818 = vmatpush.msra.mxu0 %v543
        %819 = vmatpush.msra.mxu0 %v541
        %820 = vmatpush.msra.mxu0 %v539
        %821 = vmatpush.msra.mxu0 %v537
        %822 = vmatpush.msra.mxu0 %v535
        %823 = vmatmul.f32.gmra.mxu0 %v448
        %v824 = vpop.f32.mrf.mxu0
        %v825 = vadd.f32 %v790, %v824
        %826 = vmatmul.f32.gmra.mxu0 %v452
        %v827 = vpop.f32.mrf.mxu0
        %v828 = vadd.f32 %v793, %v827
        %829 = vmatmul.f32.gmra.mxu0 %v456
        %v830 = vpop.f32.mrf.mxu0
        %v831 = vadd.f32 %v796, %v830
        %832 = vmatmul.f32.gmra.mxu0 %v460
        %v833 = vpop.f32.mrf.mxu0
        %v834 = vadd.f32 %v799, %v833
        %835 = vmatmul.f32.gmra.mxu0 %v464
        %v836 = vpop.f32.mrf.mxu0
        %v837 = vadd.f32 %v802, %v836
        %838 = vmatmul.f32.gmra.mxu0 %v468
        %v839 = vpop.f32.mrf.mxu0
        %v840 = vadd.f32 %v805, %v839
        %841 = vdwg.mxu0
        %842 = vmatpush.msra.mxu0 0.0
        %843 = vmatpush.msra.mxu0 0.0
        %844 = vmatpush.msra.mxu0 0.0
        %845 = vmatpush.msra.mxu0 0.0
        %846 = vmatpush.msra.mxu0 0.0
        %847 = vmatpush.msra.mxu0 0.0
        %848 = vmatpush.msra.mxu0 0.0
        %849 = vmatpush.msra.mxu0 0.0
        %850 = vmatpush.msra.mxu0 0.0
        %851 = vmatpush.msra.mxu0 0.0
        %852 = vmatpush.msra.mxu0 %v577
        %853 = vmatpush.msra.mxu0 %v575
        %854 = vmatpush.msra.mxu0 %v573
        %855 = vmatpush.msra.mxu0 %v571
        %856 = vmatpush.msra.mxu0 %v569
        %857 = vmatpush.msra.mxu0 %v567
        %858 = vmatmul.f32.gmra.mxu0 %v580
        %v859 = vpop.f32.mrf.mxu0
        %v860 = vadd.f32 %v825, %v859
        %861 = vmatmul.f32.gmra.mxu0 %v583
        %v862 = vpop.f32.mrf.mxu0
        %v863 = vadd.f32 %v828, %v862
        %864 = vmatmul.f32.gmra.mxu0 %v586
        %v865 = vpop.f32.mrf.mxu0
        %v866 = vadd.f32 %v831, %v865
        %867 = vmatmul.f32.gmra.mxu0 %v589
        %v868 = vpop.f32.mrf.mxu0
        %v869 = vadd.f32 %v834, %v868
        %870 = vmatmul.f32.gmra.mxu0 %v592
        %v871 = vpop.f32.mrf.mxu0
        %v872 = vadd.f32 %v837, %v871
        %873 = vmatmul.f32.gmra.mxu0 %v595
        %v874 = vpop.f32.mrf.mxu0
        %v875 = vadd.f32 %v840, %v874
        %876 = vdwg.mxu0
        %v877 = vld [vmem:[%s3] sm:$0xff]
        %v878 = vld [vmem:[%s3 + $0x8] sm:$0xff]
        %v879 = vld [vmem:[%s3 + $0x10] sm:$0xff]
        %v880 = vld [vmem:[%s3 + $0x18] sm:$0xff]
        %v881 = vld [vmem:[%s3 + $0x20] sm:$0xff]
        %v882 = vld [vmem:[%s3 + $0x28] sm:$0xff]
        %884 = vset.pattern.permute.xlu0 0
        %885 = vperm.xlu0 %884, %v877
        %v886 = vpop.permute.xlu0 %885
        %889 = vset.pattern.permute.xlu0 0
        %890 = vperm.xlu0 %889, %v878
        %v891 = vpop.permute.xlu0 %890
        %894 = vset.pattern.permute.xlu0 0
        %895 = vperm.xlu0 %894, %v879
        %v896 = vpop.permute.xlu0 %895
        %899 = vset.pattern.permute.xlu0 0
        %900 = vperm.xlu0 %899, %v880
        %v901 = vpop.permute.xlu0 %900
        %904 = vset.pattern.permute.xlu0 0
        %905 = vperm.xlu0 %904, %v881
        %v906 = vpop.permute.xlu0 %905
        %909 = vset.pattern.permute.xlu0 0
        %910 = vperm.xlu0 %909, %v882
        %v911 = vpop.permute.xlu0 %910
        %v913 = vmul.f32 %v720, %v886
        %v914 = vmul.f32 %v860, %v886
        %v915 = vmul.f32 %v723, %v891
        %v916 = vmul.f32 %v863, %v891
        %v917 = vmul.f32 %v726, %v896
        %v918 = vmul.f32 %v866, %v896
        %v919 = vmul.f32 %v729, %v901
        %v920 = vmul.f32 %v869, %v901
        %v921 = vmul.f32 %v732, %v906
        %v922 = vmul.f32 %v872, %v906
        %v923 = vmul.f32 %v735, %v911
        %v924 = vmul.f32 %v875, %v911
        %v925 = vld [vmem:[%s4] sm:$0xff]
        %v926 = vld [vmem:[%s4 + $0x8] sm:$0xff]
        %v927 = vld [vmem:[%s4 + $0x10] sm:$0xff]
        %v928 = vld [vmem:[%s4 + $0x18] sm:$0xff]
        %v929 = vld [vmem:[%s4 + $0x20] sm:$0xff]
        %v930 = vld [vmem:[%s4 + $0x28] sm:$0xff]
        %932 = vset.pattern.permute.xlu0 0
        %933 = vperm.xlu0 %932, %v925
        %v934 = vpop.permute.xlu0 %933
        %937 = vset.pattern.permute.xlu0 0
        %938 = vperm.xlu0 %937, %v926
        %v939 = vpop.permute.xlu0 %938
        %942 = vset.pattern.permute.xlu0 0
        %943 = vperm.xlu0 %942, %v927
        %v944 = vpop.permute.xlu0 %943
        %947 = vset.pattern.permute.xlu0 0
        %948 = vperm.xlu0 %947, %v928
        %v949 = vpop.permute.xlu0 %948
        %952 = vset.pattern.permute.xlu0 0
        %953 = vperm.xlu0 %952, %v929
        %v954 = vpop.permute.xlu0 %953
        %957 = vset.pattern.permute.xlu0 0
        %958 = vperm.xlu0 %957, %v930
        %v959 = vpop.permute.xlu0 %958
        %v961 = vadd.f32 %v913, %v934
        %v962 = vadd.f32 %v914, %v934
        %v963 = vadd.f32 %v915, %v939
        %v964 = vadd.f32 %v916, %v939
        %v965 = vadd.f32 %v917, %v944
        %v966 = vadd.f32 %v918, %v944
        %v967 = vadd.f32 %v919, %v949
        %v968 = vadd.f32 %v920, %v949
        %v969 = vadd.f32 %v921, %v954
        %v970 = vadd.f32 %v922, %v954
        %v971 = vadd.f32 %v923, %v959
        %v972 = vadd.f32 %v924, %v959
        %v973 = vadd.f32 %v961, %v965
        %v974 = vadd.f32 %v962, %v966
        %v975 = vadd.f32 %v963, %v967
        %v976 = vadd.f32 %v964, %v968
        %v977 = vadd.f32 %v973, %v969
        %v978 = vadd.f32 %v974, %v970
        %v979 = vadd.f32 %v975, %v971
        %v980 = vadd.f32 %v976, %v972
        %v981 = vadd.f32 %v977, %v978
        %982 = vadd.xlane.f32.xlu0 %v981
        %v983 = vpop.xlane.xlu0 %982
        %v984 = vadd.f32 %v979, %v980
        %985 = vadd.xlane.f32.xlu0 %v984
        %v986 = vpop.xlane.xlu0 %985
        %v987 = vrcp.pop 256.0
        %v988 = vmul.f32 256.0, %v987
        %v989 = vsub.f32 1.0, %v988
        %v990 = vmul.f32 %v987, %v989
        %v991 = vadd.f32 %v987, %v990
        %vm992 = vweird.f32 %v987
        %v993 = vsel %vm992, %v987, %v991
        %v994 = vmul.f32 %v983, %v993
        %v995 = vmul.f32 %v986, %v993
        %v996 = vmax.f32 %v977, %v978
        %997 = vmax.xlane.f32.xlu0 %v996
        %v998 = vpop.xlane.xlu0 %997
        %v999 = vmax.f32 %v979, %v980
        %1000 = vmax.xlane.f32.xlu0 %v999
        %v1001 = vpop.xlane.xlu0 %1000
        %v1002 = vadd.f32 %v994, %v998
        %v1003 = vadd.f32 %v995, %v1001
        %v1004 = vld [vmem:[%s5] sm:$0xff]
        %v1005 = vld [vmem:[%s6] sm:$0xff]
        %vm1006 = vcmask 130048
        %v1008 = vsel %vm1006, %v1004, 0
        %1010 = vmatpush.msra.mxu0 0.0
        %1011 = vmatpush.msra.mxu0 0.0
        %1012 = vmatpush.msra.mxu0 0.0
        %1013 = vmatpush.msra.mxu0 0.0
        %1014 = vmatpush.msra.mxu0 0.0
        %1015 = vmatpush.msra.mxu0 0.0
        %1016 = vmatpush.msra.mxu0 0.0
        %1017 = vmatpush.msra.mxu0 0.0
        %1018 = vmatpush.msra.mxu0 0.0
        %1019 = vmatpush.msra.mxu0 0.0
        %1020 = vmatpush.msra.mxu0 0.0
        %1021 = vmatpush.msra.mxu0 0.0
        %1022 = vmatpush.msra.mxu0 0.0
        %1023 = vmatpush.msra.mxu0 0.0
        %1024 = vmatpush.msra.mxu0 %v1003
        %1025 = vmatpush.msra.mxu0 %v1002
        %1026 = vmatmul.f32.gmra.mxu0 %v1008
        %v1027 = vpop.f32.mrf.mxu0
        %v1028 = vadd.f32 %v1005, %v1027
        %1029 = vdwg.mxu0
        %v1030 = vmax.f32 %v1028, 0.0
        %v1031 = vld [vmem:[%s7] sm:$0xff]
        %v1032 = vld [vmem:[%s7 + $0x8] sm:$0xff]
        %v1033 = vld [vmem:[%s7 + $0x10] sm:$0xff]
        %v1034 = vld [vmem:[%s7 + $0x18] sm:$0xff]
        %v1035 = vld [vmem:[%s7 + $0x20] sm:$0xff]
        %v1036 = vld [vmem:[%s7 + $0x28] sm:$0xff]
        %v1037 = vld [vmem:[%s8] sm:$0xff]
        %v1038 = vld [vmem:[%s8 + $0x8] sm:$0xff]
        %v1039 = vld [vmem:[%s8 + $0x10] sm:$0xff]
        %v1040 = vld [vmem:[%s8 + $0x18] sm:$0xff]
        %v1041 = vld [vmem:[%s8 + $0x20] sm:$0xff]
        %v1042 = vld [vmem:[%s8 + $0x28] sm:$0xff]
        %vm1043 = vcmask 64512
        %v1045 = vsel %vm1043, %v1031, 0
        %v1048 = vsel %vm1043, %v1032, 0
        %v1051 = vsel %vm1043, %v1033, 0
        %v1054 = vsel %vm1043, %v1034, 0
        %v1057 = vsel %vm1043, %v1035, 0
        %v1060 = vsel %vm1043, %v1036, 0
        %1062 = vmatpush.msra.mxu0 0.0
        %1063 = vmatpush.msra.mxu0 0.0
        %1064 = vmatpush.msra.mxu0 0.0
        %1065 = vmatpush.msra.mxu0 0.0
        %1066 = vmatpush.msra.mxu0 0.0
        %1067 = vmatpush.msra.mxu0 0.0
        %1068 = vmatpush.msra.mxu0 0.0
        %1069 = vmatpush.msra.mxu0 0.0
        %1070 = vmatpush.msra.mxu0 0.0
        %1071 = vmatpush.msra.mxu0 0.0
        %1072 = vmatpush.msra.mxu0 0.0
        %1073 = vmatpush.msra.mxu0 0.0
        %1074 = vmatpush.msra.mxu0 0.0
        %1075 = vmatpush.msra.mxu0 0.0
        %1076 = vmatpush.msra.mxu0 0.0
        %1077 = vmatpush.msra.mxu0 %v1030
        %1078 = vmatmul.f32.gmra.mxu0 %v1045
        %v1079 = vpop.f32.mrf.mxu0
        %v1080 = vadd.f32 %v1037, %v1079
        %1081 = vmatmul.f32.gmra.mxu0 %v1048
        %v1082 = vpop.f32.mrf.mxu0
        %v1083 = vadd.f32 %v1038, %v1082
        %1084 = vmatmul.f32.gmra.mxu0 %v1051
        %v1085 = vpop.f32.mrf.mxu0
        %v1086 = vadd.f32 %v1039, %v1085
        %1087 = vmatmul.f32.gmra.mxu0 %v1054
        %v1088 = vpop.f32.mrf.mxu0
        %v1089 = vadd.f32 %v1040, %v1088
        %1090 = vmatmul.f32.gmra.mxu0 %v1057
        %v1091 = vpop.f32.mrf.mxu0
        %v1092 = vadd.f32 %v1041, %v1091
        %1093 = vmatmul.f32.gmra.mxu0 %v1060
        %v1094 = vpop.f32.mrf.mxu0
        %v1095 = vadd.f32 %v1042, %v1094
        %1096 = vdwg.mxu0
        %vm1097 = vcmask 7168
        %v1098 = vsel %vm1097, %v1080, -inf
        %v1099 = vsel %vm1097, %v1083, -inf
        %v1100 = vmax.f32 %v1098, %v1099
        %v1101 = vrot.slane %v1100, 4
        %v1102 = vmax.f32 %v1100, %v1101
        %v1103 = vrot.slane %v1102, 2
        %v1104 = vmax.f32 %v1102, %v1103
        %v1105 = vrot.slane %v1104, 1
        %v1106 = vmax.f32 %v1104, %v1105
        %v1107 = vsub.f32 %v1080, %v1106
        %v1108 = vsub.f32 %v1083, %v1106
        %v1109 = vmul.f32 %v1107, 1.442695
        %v1110 = vpow.pop %v1109
        %v1111 = vmul.f32 %v1108, 1.442695
        %v1112 = vpow.pop %v1111
        %v1113 = vsel %vm1097, %v1110, 0.0
        %v1114 = vsel %vm1097, %v1112, 0.0
        %v1115 = vadd.f32 %v1113, %v1114
        %v1116 = vrot.slane %v1115, 4
        %v1117 = vadd.f32 %v1115, %v1116
        %v1118 = vrot.slane %v1117, 2
        %v1119 = vadd.f32 %v1117, %v1118
        %v1120 = vrot.slane %v1119, 1
        %v1121 = vadd.f32 %v1119, %v1120
        %v1122 = vrcp.pop %v1121
        %v1123 = vmul.f32 %v1110, %v1122
        %v1124 = vmul.f32 %v1112, %v1122
        %v1125 = vsel %vm1097, %v1086, -inf
        %v1126 = vsel %vm1097, %v1089, -inf
        %v1127 = vmax.f32 %v1125, %v1126
        %v1128 = vrot.slane %v1127, 4
        %v1129 = vmax.f32 %v1127, %v1128
        %v1130 = vrot.slane %v1129, 2
        %v1131 = vmax.f32 %v1129, %v1130
        %v1132 = vrot.slane %v1131, 1
        %v1133 = vmax.f32 %v1131, %v1132
        %v1134 = vsub.f32 %v1086, %v1133
        %v1135 = vsub.f32 %v1089, %v1133
        %v1136 = vmul.f32 %v1134, 1.442695
        %v1137 = vpow.pop %v1136
        %v1138 = vmul.f32 %v1135, 1.442695
        %v1139 = vpow.pop %v1138
        %v1140 = vsel %vm1097, %v1137, 0.0
        %v1141 = vsel %vm1097, %v1139, 0.0
        %v1142 = vadd.f32 %v1140, %v1141
        %v1143 = vrot.slane %v1142, 4
        %v1144 = vadd.f32 %v1142, %v1143
        %v1145 = vrot.slane %v1144, 2
        %v1146 = vadd.f32 %v1144, %v1145
        %v1147 = vrot.slane %v1146, 1
        %v1148 = vadd.f32 %v1146, %v1147
        %v1149 = vrcp.pop %v1148
        %v1150 = vmul.f32 %v1137, %v1149
        %v1151 = vmul.f32 %v1139, %v1149
        %v1152 = vsel %vm1097, %v1092, -inf
        %v1153 = vsel %vm1097, %v1095, -inf
        %v1154 = vmax.f32 %v1152, %v1153
        %v1155 = vrot.slane %v1154, 4
        %v1156 = vmax.f32 %v1154, %v1155
        %v1157 = vrot.slane %v1156, 2
        %v1158 = vmax.f32 %v1156, %v1157
        %v1159 = vrot.slane %v1158, 1
        %v1160 = vmax.f32 %v1158, %v1159
        %v1161 = vsub.f32 %v1092, %v1160
        %v1162 = vsub.f32 %v1095, %v1160
        %v1163 = vmul.f32 %v1161, 1.442695
        %v1164 = vpow.pop %v1163
        %v1165 = vmul.f32 %v1162, 1.442695
        %v1166 = vpow.pop %v1165
        %v1167 = vsel %vm1097, %v1164, 0.0
        %v1168 = vsel %vm1097, %v1166, 0.0
        %v1169 = vadd.f32 %v1167, %v1168
        %v1170 = vrot.slane %v1169, 4
        %v1171 = vadd.f32 %v1169, %v1170
        %v1172 = vrot.slane %v1171, 2
        %v1173 = vadd.f32 %v1171, %v1172
        %v1174 = vrot.slane %v1173, 1
        %v1175 = vadd.f32 %v1173, %v1174
        %v1176 = vrcp.pop %v1175
        %v1177 = vmul.f32 %v1164, %v1176
        %v1178 = vmul.f32 %v1166, %v1176
        %1180 = vset.pattern.permute.xlu0 0
        %1181 = vperm.xlu0 %1180, %v1123
        %v1182 = vpop.permute.xlu0 %1181
        %1185 = vset.pattern.permute.xlu0 0
        %1186 = vperm.xlu0 %1185, %v1124
        %v1187 = vpop.permute.xlu0 %1186
        %v1189 = vmul.f32 %v1182, %v961
        %v1190 = vmul.f32 %v1182, %v962
        %v1191 = vmul.f32 %v1187, %v963
        %v1192 = vmul.f32 %v1187, %v964
        %1194 = vset.pattern.permute.xlu0 0
        %1195 = vperm.xlu0 %1194, %v1150
        %v1196 = vpop.permute.xlu0 %1195
        %1199 = vset.pattern.permute.xlu0 0
        %1200 = vperm.xlu0 %1199, %v1151
        %v1201 = vpop.permute.xlu0 %1200
        %v1203 = vmul.f32 %v1196, %v965
        %v1204 = vmul.f32 %v1196, %v966
        %v1205 = vmul.f32 %v1201, %v967
        %v1206 = vmul.f32 %v1201, %v968
        %v1207 = vadd.f32 %v1189, %v1203
        %v1208 = vadd.f32 %v1190, %v1204
        %v1209 = vadd.f32 %v1191, %v1205
        %v1210 = vadd.f32 %v1192, %v1206
        %1212 = vset.pattern.permute.xlu0 0
        %1213 = vperm.xlu0 %1212, %v1177
        %v1214 = vpop.permute.xlu0 %1213
        %1217 = vset.pattern.permute.xlu0 0
        %1218 = vperm.xlu0 %1217, %v1178
        %v1219 = vpop.permute.xlu0 %1218
        %v1221 = vmul.f32 %v1214, %v969
        %v1222 = vmul.f32 %v1214, %v970
        %v1223 = vmul.f32 %v1219, %v971
        %v1224 = vmul.f32 %v1219, %v972
        %v1225 = vadd.f32 %v1207, %v1221
        %v1226 = vadd.f32 %v1208, %v1222
        %v1227 = vadd.f32 %v1209, %v1223
        %v1228 = vadd.f32 %v1210, %v1224
        %v1229 = vld [vmem:[%s9] sm:$0xff]
        %v1230 = vld [vmem:[%s9 + $0x8] sm:$0xff]
        %v1231 = vld [vmem:[%s9 + $0x10] sm:$0xff]
        %v1233 = vsel %vm578, %v1229, 0
        %v1236 = vsel %vm578, %v1230, 0
        %v1239 = vsel %vm578, %v1231, 0
        %1241 = vmatpush.msra.mxu0 0.0
        %1242 = vmatpush.msra.mxu0 0.0
        %1243 = vmatpush.msra.mxu0 0.0
        %1244 = vmatpush.msra.mxu0 0.0
        %1245 = vmatpush.msra.mxu0 0.0
        %1246 = vmatpush.msra.mxu0 0.0
        %1247 = vmatpush.msra.mxu0 0.0
        %1248 = vmatpush.msra.mxu0 0.0
        %1249 = vmatpush.msra.mxu0 0.0
        %1250 = vmatpush.msra.mxu0 0.0
        %1251 = vmatpush.msra.mxu0 %v971
        %1252 = vmatpush.msra.mxu0 %v969
        %1253 = vmatpush.msra.mxu0 %v967
        %1254 = vmatpush.msra.mxu0 %v965
        %1255 = vmatpush.msra.mxu0 %v963
        %1256 = vmatpush.msra.mxu0 %v961
        %1257 = vmatmul.f32.gmra.mxu0 %v1233
        %v1258 = vpop.f32.mrf.mxu0
        %v1259 = vadd.f32 0.0, %v1258
        %1260 = vmatmul.f32.gmra.mxu0 %v1236
        %v1261 = vpop.f32.mrf.mxu0
        %v1262 = vadd.f32 0.0, %v1261
        %1263 = vmatmul.f32.gmra.mxu0 %v1239
        %v1264 = vpop.f32.mrf.mxu0
        %v1265 = vadd.f32 0.0, %v1264
        %1266 = vdwg.mxu0
        %1267 = vmatpush.msra.mxu0 0.0
        %1268 = vmatpush.msra.mxu0 0.0
        %1269 = vmatpush.msra.mxu0 0.0
        %1270 = vmatpush.msra.mxu0 0.0
        %1271 = vmatpush.msra.mxu0 0.0
        %1272 = vmatpush.msra.mxu0 0.0
        %1273 = vmatpush.msra.mxu0 0.0
        %1274 = vmatpush.msra.mxu0 0.0
        %1275 = vmatpush.msra.mxu0 0.0
        %1276 = vmatpush.msra.mxu0 0.0
        %1277 = vmatpush.msra.mxu0 %v972
        %1278 = vmatpush.msra.mxu0 %v970
        %1279 = vmatpush.msra.mxu0 %v968
        %1280 = vmatpush.msra.mxu0 %v966
        %1281 = vmatpush.msra.mxu0 %v964
        %1282 = vmatpush.msra.mxu0 %v962
        %1283 = vmatmul.f32.gmra.mxu0 %v1233
        %v1284 = vpop.f32.mrf.mxu0
        %v1285 = vadd.f32 0.0, %v1284
        %1286 = vmatmul.f32.gmra.mxu0 %v1236
        %v1287 = vpop.f32.mrf.mxu0
        %v1288 = vadd.f32 0.0, %v1287
        %1289 = vmatmul.f32.gmra.mxu0 %v1239
        %v1290 = vpop.f32.mrf.mxu0
        %v1291 = vadd.f32 0.0, %v1290
        %1292 = vdwg.mxu0
        %v1293 = vmax.f32 %v1259, 0.0
        %v1294 = vmax.f32 %v1285, 0.0
        %v1295 = vmax.f32 %v1262, 0.0
        %v1296 = vmax.f32 %v1288, 0.0
        %v1297 = vsub.f32 0.0, %v1265
        %v1298 = vsub.f32 0.0, %v1291
        %v1299 = vmul.f32 %v1297, 1.442695
        %v1300 = vpow.pop %v1299
        %v1301 = vmul.f32 %v1298, 1.442695
        %v1302 = vpow.pop %v1301
        %v1303 = vadd.f32 %v1300, 1.0
        %v1304 = vadd.f32 %v1302, 1.0
        %v1305 = vrcp.pop %v1303
        %v1306 = vrcp.pop %v1304
        %v1307 = vperm.slane %v1305, 0
        %v1308 = vperm.slane %v1306, 0
        %v1309 = vmul.f32 %v1293, %v1307
        %v1310 = vmul.f32 %v1294, %v1308
        %v1311 = vmul.f32 %v1295, %v1307
        %v1312 = vmul.f32 %v1296, %v1308
        %v1313 = vld [vmem:[#allocation2] sm:$0x1]
        %s1314 = vtos %v1313
        %v1315 = vld [vmem:[%s445] sm:$0xff]
        %v1316 = vld [vmem:[%s445 + $0x8] sm:$0xff]
        %v1317 = vld [vmem:[%s445 + $0x10] sm:$0xff]
        %v1318 = vld [vmem:[%s445 + $0x18] sm:$0xff]
        %v1319 = vstv %s1314
        %v1320 = vmul.f32 %v1319, %v1225
        %v1321 = vmul.f32 %v1319, %v1226
        %v1322 = vmul.f32 %v1319, %v1227
        %v1323 = vmul.f32 %v1319, %v1228
        %v1324 = vadd.f32 %v1315, %v1320
        %v1325 = vadd.f32 %v1316, %v1321
        %v1326 = vadd.f32 %v1317, %v1322
        %v1327 = vadd.f32 %v1318, %v1323
        %s1328 = ssub.f32 1.0, %s1314
        %v1329 = vstv %s1328
        %v1330 = vmul.f32 %v1329, %v1309
        %v1331 = vmul.f32 %v1329, %v1310
        %v1332 = vmul.f32 %v1329, %v1311
        %v1333 = vmul.f32 %v1329, %v1312
        %v1334 = vadd.f32 %v1324, %v1330
        %v1335 = vadd.f32 %v1325, %v1331
        %v1336 = vadd.f32 %v1326, %v1332
        %v1337 = vadd.f32 %v1327, %v1333
        %v1338 = vmax.f32 %v1334, 0.0
        %v1339 = vmax.f32 %v1335, 0.0
        %v1340 = vmax.f32 %v1336, 0.0
        %v1341 = vmax.f32 %v1337, 0.0
        %1342 = vst [vmem:[%s440] sm:$0xff] %v1338
        %1343 = vst [vmem:[%s440 + $0x8] sm:$0xff] %v1339
        %1344 = vst [vmem:[%s440 + $0x10] sm:$0xff] %v1340
        %1345 = vst [vmem:[%s440 + $0x18] sm:$0xff] %v1341
        %s1346 = sand.u32 %s280, 1
        %s1347 = scalar_lea.sflag [#allocation5], %s1346
        %s1348 = sand.u32 %s280, 1
        %s1349 = smul.addr %s1348, 32
        %s1350 = scalar_lea.vmem [#allocation8], %s1349
        // Predicated region
        $region73: #{tpu_custom_call.1} parent=63 // pred_check
          %p1351 = pneg %p290
        $region74: #{tpu_custom_call.1} parent=63 // pred_check_branch
          %1353 = sbr.rel (%p1351) target = $region76
        $region75: #{tpu_custom_call.1} parent=63 // pred_region
          %1355 = vsyncadd %s1347, 0
          %s1356 = smul.addr %s31, 4
          %s1357 = smul.addr %s1356, 8
          %s1358 = scalar_lea.hbm %s11, %s1357
          %s1359 = sshll.u32 %s1350, 4
          %s1360 = int_to_ptr.vmem [resolvable:$true] %s1359
          %s1361 = sshll.u32 %s1358, 4
          %s1362 = int_to_ptr.hbm [resolvable:$true] %s1361
          %1367 = dma.vmem_to_hbm [thread:$0]  %s1360, 512, %s1362, %s1347, 256, 256, 16
        $region76: #{tpu_custom_call.1} parent=63 // pred_fallthru
          _
      $region64: #{tpu_custom_call.1} parent=5 // pred_fallthru
        _
      %p1368 = scmp.le.s32.totalorder 2, %s26
      // Predicated region
      $region77: #{tpu_custom_call.1} parent=5 // pred_check
        %p1369 = pneg %p1368
      $region78: #{tpu_custom_call.1} parent=5 // pred_check_branch
        %1371 = sbr.rel (%p1369) target = $region80
      $region79: #{tpu_custom_call.1} parent=5 // pred_region
        %s1372 = ssub.s32 %s26, 2
        // Predicated region
        $region81: #{tpu_custom_call.1} parent=79 // pred_check
          %p1373 = pneg %p296
        $region82: #{tpu_custom_call.1} parent=79 // pred_check_branch
          %1375 = sbr.rel (%p1373) target = $region84
        $region83: #{tpu_custom_call.1} parent=79 // pred_region
          %s1376 = sand.u32 %s281, 1
          %s1377 = scalar_lea.sflag [#allocation5], %s1376
          %s1378 = sand.u32 %s281, 1
          %s1379 = smul.addr %s1378, 32
          %s1380 = scalar_lea.vmem [#allocation8], %s1379
          %1382 = dma.done %s1377, 512
        $region84: #{tpu_custom_call.1} parent=79 // pred_fallthru
          _
      $region80: #{tpu_custom_call.1} parent=5 // pred_fallthru
        _
    $region6: #{tpu_custom_call.1} parent=1 // loop_footer
      %s30 = sadd.s32 1, %s26
    $region7: #{tpu_custom_call.1} parent=1 // loop_footer_branch
      %25 = sbr.rel target = $region3
    $region8: #{tpu_custom_call.1} parent=1 // loop_exit
      _
    %1383 = vsyncpa [#allocation4], 1
    %s1384 = scalar_lea.sflag [#allocation4], 1
    %1385 = vsyncpa %s1384, 1
    %1386 = vsyncpa [#allocation7], 1
    %1387 = vsyncpa [#allocation5], 1
    %s1388 = scalar_lea.sflag [#allocation5], 1
    %1389 = vsyncpa %s1388, 1

</llo_original>
